<compile_context>
chip_gen: v6e
topology: v6e:2x2x1
jax: 0.10.0
libtpu: 0.0.40
codegen_flags: <defaults>
</compile_context>

<pallas_src>
import jax
import jax.numpy as jnp
from jax import lax
from jax.experimental import pallas as pl
from jax.experimental.pallas import tpu as pltpu


def _round_up(x, m):
    return (x + m - 1) // m * m


def _vmem_estimate(block_b, n_pad, dim, out_bytes):
    """Rough per-grid-step VMEM footprint in bytes (blocks + temporaries)."""
    m = block_b * n_pad
    return (2 * m * dim * 2                       # x blocks (bf16, double-buffered)
            + 2 * m * dim * out_bytes             # out blocks (double-buffered)
            + 2 * (3 * dim * dim + dim * dim) * 2  # bf16 weights (double-buffered)
            + m * dim * 2                         # ctx scratch (bf16)
            + m * 3 * dim * 4                     # fused QKV intermediate (f32)
            + 3 * m * dim * 2                     # bf16 q/k/v copies
            + 3 * block_b * n_pad * n_pad * 4)    # score / softmax temporaries (f32)


_VMEM_SOFT_LIMIT = 30 * 1024 * 1024  # stay near the 32 MiB scoped default


def _pick_block_b(batch, n_pad, dim, out_bytes):
    # Largest batch tile that (a) divides B, (b) leaves >=2 grid steps so both
    # v7x TensorCores get work, and (c) fits the VMEM soft budget.
    for bt in (8, 4, 2):
        if (batch % bt == 0 and batch // bt >= 2
                and _vmem_estimate(bt, n_pad, dim, out_bytes) <= _VMEM_SOFT_LIMIT):
            return bt
    return 1


def _make_attention_kernel(block_b, n_pad, n_valid, dim, heads, project_out):
    d_k = dim // heads
    scale = d_k ** (-0.5)
    m = block_b * n_pad

    def kernel(x_ref, wqkv_ref, wout_ref, bout_ref, o_ref, ctx_ref):
        # x_ref:    (block_b, n_pad, dim)  bf16
        # wqkv_ref: (dim, 3*dim)           bf16 (y = x @ W layout)
        # wout_ref: (dim, dim)             bf16
        # bout_ref: (1, dim)               f32
        # o_ref:    (block_b, n_pad, dim)  input dtype
        # ctx_ref:  (m, dim)               bf16 VMEM scratch for head outputs

        # --- fused QKV projection: one big (m, dim) @ (dim, 3*dim) MXU matmul
        x2 = x_ref[...].reshape(m, dim)
        qkv = jnp.dot(x2, wqkv_ref[...],
                      preferred_element_type=jnp.float32)        # (m, 3*dim) f32

        # Fold the softmax scale into Q once for all heads; single bf16 cast of
        # each third of the slab (one VPU pass each instead of one per head).
        q_all = (qkv[:, :dim] * scale).astype(jnp.bfloat16).reshape(
            block_b, n_pad, dim)
        k_all = qkv[:, dim:2 * dim].astype(jnp.bfloat16).reshape(
            block_b, n_pad, dim)
        v_all = qkv[:, 2 * dim:3 * dim].astype(jnp.bfloat16).reshape(
            block_b, n_pad, dim)

        # Key-padding bias, hoisted out of the head loop (only traced if padded).
        if n_pad != n_valid:
            col = lax.broadcasted_iota(jnp.int32, (1, 1, n_pad), 2)
            mask_bias = jnp.where(col < n_valid, 0.0, -1e30).astype(jnp.float32)

        for h in range(heads):
            sl = slice(h * d_k, (h + 1) * d_k)
            q3 = q_all[:, :, sl]                              # (Bt, Np, d_k) bf16
            k3 = k_all[:, :, sl]
            v3 = v_all[:, :, sl]

            # Batched over the batch tile; contracts d_k, no explicit k.T.
            dots = jnp.einsum('bqd,bkd->bqk', q3, k3,
                              preferred_element_type=jnp.float32)  # (Bt, Np, Np)
            if n_pad != n_valid:
                dots = dots + mask_bias

            dots = dots - jnp.max(dots, axis=-1, keepdims=True)
            e = jnp.exp(dots)
            denom = jnp.sum(e, axis=-1, keepdims=True)
            # dropout p=0.0 -> identity
            attn = e * pl.reciprocal(denom, approx=True)

            head_out = jnp.einsum('bqk,bkd->bqd', attn.astype(jnp.bfloat16), v3,
                                  preferred_element_type=jnp.float32)
            # Write straight into the VMEM scratch slab (static lane slice).
            ctx_ref[:, sl] = head_out.reshape(m, d_k).astype(jnp.bfloat16)

        if project_out:
            # --- output projection: one (m, dim) @ (dim, dim) MXU matmul + bias
            bias = bout_ref[...].astype(jnp.float32)          # (1, dim)
            y = jnp.dot(ctx_ref[...], wout_ref[...],
                        preferred_element_type=jnp.float32) + bias
            o_ref[...] = y.reshape(block_b, n_pad, dim).astype(o_ref.dtype)
        else:
            # heads == 1 -> to_out is nn.Identity()
            o_ref[...] = ctx_ref[...].reshape(block_b, n_pad, dim).astype(o_ref.dtype)

    return kernel


def attention_vit(x, w_qkv, w_out, b_out, heads):
    """x: (B, N, D); w_qkv: (D, 3D); w_out: (D, D); b_out: (D,).

    Weights are stored transposed w.r.t. torch.nn.Linear so y = x @ W.
    When heads == 1 the PyTorch module uses nn.Identity() for to_out; in that
    case w_out / b_out are ignored (still passed for a uniform signature).
    """
    B, N, D = x.shape
    assert D % heads == 0
    out_dtype = x.dtype
    d_k = D // heads
    project_out = heads != 1

    # Pad the sequence so the (N, N) score matrices are lane-dense for real ViT
    # shapes (197 -> 256); tiny sequences only need sublane (8) alignment.
    n_pad = _round_up(N, 128) if N >= 128 else _round_up(N, 8)
    out_bytes = jnp.dtype(out_dtype).itemsize
    block_b = _pick_block_b(B, n_pad, D, out_bytes)
    grid = (B // block_b,)

    x_p = x if n_pad == N else jnp.pad(x, ((0, 0), (0, n_pad - N), (0, 0)))
    # bf16 operands feed the MXU at full rate; accumulation stays f32 in-kernel.
    x_bf = x_p.astype(jnp.bfloat16)
    wqkv_bf = w_qkv.astype(jnp.bfloat16)
    wout_bf = w_out.astype(jnp.bfloat16)
    bout2 = b_out.reshape(1, D).astype(jnp.float32)

    kernel = _make_attention_kernel(block_b, n_pad, N, D, heads, project_out)

    # VMEM budget: only raise the limit when the 32 MiB scoped default would be
    # too small; cap well under v7x's 64 MiB physical VMEM.
    est = _vmem_estimate(block_b, n_pad, D, out_bytes)
    cp_kwargs = dict(dimension_semantics=("parallel",))
    if est > 28 * 1024 * 1024:
        cp_kwargs["vmem_limit_bytes"] = min(int(est * 1.5), 48 * 1024 * 1024)

    cost = pl.CostEstimate(
        flops=(2 * B * n_pad * D * 3 * D                 # QKV projection
               + 4 * B * heads * n_pad * n_pad * d_k     # QK^T + attn@V
               + (2 * B * n_pad * D * D if project_out else 0)),  # out projection
        transcendentals=B * heads * n_pad * n_pad,
        bytes_accessed=(B * n_pad * D * (2 + out_bytes)  # x in (bf16) + out
                        + 4 * D * D * 2 + D * 4),        # weights (bf16) + bias
    )

    y = pl.pallas_call(
        kernel,
        out_shape=jax.ShapeDtypeStruct((B, n_pad, D), out_dtype),
        grid_spec=pltpu.PrefetchScalarGridSpec(
            num_scalar_prefetch=0,
            grid=grid,
            in_specs=[
                pl.BlockSpec((block_b, n_pad, D), lambda i: (i, 0, 0)),
                pl.BlockSpec((D, 3 * D), lambda i: (0, 0)),
                pl.BlockSpec((D, D), lambda i: (0, 0)),
                pl.BlockSpec((1, D), lambda i: (0, 0)),
            ],
            out_specs=pl.BlockSpec((block_b, n_pad, D), lambda i: (i, 0, 0)),
            scratch_shapes=[pltpu.VMEM((block_b * n_pad, D), jnp.bfloat16)],
        ),
        compiler_params=pltpu.CompilerParams(**cp_kwargs),
        cost_estimate=cost,
    )(x_bf, wqkv_bf, wout_bf, bout2)

    if n_pad != N:
        y = y[:, :N, :]
    return y


def attention_vit_ref(x, w_qkv, w_out, b_out, heads):
    """Pure-JAX reference mirroring the PyTorch forward."""
    B, N, D = x.shape
    d_k = D // heads
    qkv = x @ w_qkv                                       # (B, N, 3D)
    q, k, v = jnp.split(qkv, 3, axis=-1)

    def split_heads(t):
        return t.reshape(B, N, heads, d_k).transpose(0, 2, 1, 3)

    q, k, v = map(split_heads, (q, k, v))
    dots = jnp.einsum('bhnd,bhmd->bhnm', q, k) * (d_k ** -0.5)
    attn = jax.nn.softmax(dots, axis=-1)
    out = jnp.einsum('bhnm,bhmd->bhnd', attn, v)
    out = out.transpose(0, 2, 1, 3).reshape(B, N, D)
    if heads == 1:
        return out
    return out @ w_out + b_out


if __name__ == "__main__":
    # Small shapes consistent with the module: dim % heads == 0.
    B, N, D, heads = 2, 8, 32, 8

    key = jax.random.PRNGKey(0)
    kx, k1, k2, k3 = jax.random.split(key, 4)

    x = jax.random.normal(kx, (B, N, D), dtype=jnp.float32)
    # PyTorch Linear weight is (out, in); store the transposed (in, out) form
    # so the kernel computes y = x @ W.
    w_qkv = jax.random.normal(k1, (D, 3 * D), dtype=jnp.float32) * 0.05
    w_out = jax.random.normal(k2, (D, D), dtype=jnp.float32) * 0.05
    b_out = jax.random.normal(k3, (D,), dtype=jnp.float32) * 0.05

    y = attention_vit(x, w_qkv, w_out, b_out, heads)
    y = jax.block_until_ready(y)

    y_ref = attention_vit_ref(x, w_qkv, w_out, b_out, heads)
    # bf16 MXU operands (f32 accumulation) -> looser tolerance than pure f32.
    assert jnp.allclose(y, y_ref, atol=2e-2, rtol=2e-2), "mismatch vs reference"

    print("KERNEL_OK")
</pallas_src>

<mosaic_0001>
module attributes {stable_mosaic.version = 11 : i64} {
  func.func @kernel(%arg0: i32, %arg1: memref<1x8x32xbf16, #tpu.memory_space<vmem>>, %arg2: memref<32x96xbf16, #tpu.memory_space<vmem>>, %arg3: memref<32x32xbf16, #tpu.memory_space<vmem>>, %arg4: memref<1x32xf32, #tpu.memory_space<vmem>>, %arg5: memref<1x8x32xf32, #tpu.memory_space<vmem>>, %arg6: memref<8x32xbf16, #tpu.memory_space<vmem>>) attributes {dimension_semantics = [#tpu.dimension_semantics<parallel>], iteration_bounds = array<i64: 2>, scalar_prefetch = 0 : i64, scratch_operands = 1 : i64, tpu.core_type = #tpu.core_type<tc>, window_params = [{transform_indices = @transform_0, window_bounds = array<i64: 1, 8, 32>}, {pipeline_mode = #tpu.pipeline_mode<synchronous>, transform_indices = @transform_1, window_bounds = array<i64: 32, 96>}, {pipeline_mode = #tpu.pipeline_mode<synchronous>, transform_indices = @transform_2, window_bounds = array<i64: 32, 32>}, {pipeline_mode = #tpu.pipeline_mode<synchronous>, transform_indices = @transform_3, window_bounds = array<i64: 1, 32>}, {transform_indices = @transform_4, window_bounds = array<i64: 1, 8, 32>}]} {
    %c0 = arith.constant 0 : index
    %c0_0 = arith.constant 0 : index
    %c0_1 = arith.constant 0 : index
    %0 = vector.load %arg1[%c0, %c0_0, %c0_1] : memref<1x8x32xbf16, #tpu.memory_space<vmem>>, vector<1x8x32xbf16>
    %1 = vector.shape_cast %0 : vector<1x8x32xbf16> to vector<8x32xbf16>
    %c0_2 = arith.constant 0 : index
    %c0_3 = arith.constant 0 : index
    %2 = vector.load %arg2[%c0_2, %c0_3] : memref<32x96xbf16, #tpu.memory_space<vmem>>, vector<32x96xbf16>
    %cst = arith.constant dense<0.000000e+00> : vector<8x96xf32>
    %3 = tpu.matmul %1, %2, %cst {dimension_numbers = #tpu.dot_dimension_numbers<[1], [0], [0], [1], [0, 0, 1, 1], [], []>} : vector<8x32xbf16>, vector<32x96xbf16>, vector<8x96xf32> -> vector<8x96xf32>
    %4 = vector.extract_strided_slice %3 {offsets = [0, 0], sizes = [8, 32], strides = [1, 1]} : vector<8x96xf32> to vector<8x32xf32>
    %cst_4 = arith.constant 5.000000e-01 : f32
    %5 = vector.broadcast %cst_4 : f32 to vector<8x32xf32>
    %6 = arith.mulf %4, %5 : vector<8x32xf32>
    %7 = arith.truncf %6 : vector<8x32xf32> to vector<8x32xbf16>
    %8 = vector.shape_cast %7 : vector<8x32xbf16> to vector<1x8x32xbf16>
    %9 = vector.extract_strided_slice %3 {offsets = [0, 32], sizes = [8, 32], strides = [1, 1]} : vector<8x96xf32> to vector<8x32xf32>
    %10 = arith.truncf %9 : vector<8x32xf32> to vector<8x32xbf16>
    %11 = vector.shape_cast %10 : vector<8x32xbf16> to vector<1x8x32xbf16>
    %12 = vector.extract_strided_slice %3 {offsets = [0, 64], sizes = [8, 32], strides = [1, 1]} : vector<8x96xf32> to vector<8x32xf32>
    %13 = arith.truncf %12 : vector<8x32xf32> to vector<8x32xbf16>
    %14 = vector.shape_cast %13 : vector<8x32xbf16> to vector<1x8x32xbf16>
    %15 = vector.extract_strided_slice %8 {offsets = [0, 0, 0], sizes = [1, 8, 4], strides = [1, 1, 1]} : vector<1x8x32xbf16> to vector<1x8x4xbf16>
    %16 = vector.extract_strided_slice %11 {offsets = [0, 0, 0], sizes = [1, 8, 4], strides = [1, 1, 1]} : vector<1x8x32xbf16> to vector<1x8x4xbf16>
    %17 = vector.extract_strided_slice %14 {offsets = [0, 0, 0], sizes = [1, 8, 4], strides = [1, 1, 1]} : vector<1x8x32xbf16> to vector<1x8x4xbf16>
    "tpu.trace_start"() <{level = 10 : i32, message = "bqd,bkd->bqk"}> : () -> ()
    %cst_5 = arith.constant dense<0.000000e+00> : vector<1x8x8xf32>
    %18 = tpu.matmul %15, %16, %cst_5 {dimension_numbers = #tpu.dot_dimension_numbers<[2], [2], [1], [1], [0, 0, 0, 1, 1, 1], [0], [0]>} : vector<1x8x4xbf16>, vector<1x8x4xbf16>, vector<1x8x8xf32> -> vector<1x8x8xf32>
    "tpu.trace_stop"() : () -> ()
    %cst_6 = arith.constant dense<0xFF800000> : vector<1x8xf32>
    %19 = vector.multi_reduction <maximumf>, %18, %cst_6 [2] : vector<1x8x8xf32> to vector<1x8xf32>
    %20 = vector.shape_cast %19 : vector<1x8xf32> to vector<1x8x1xf32>
    %21 = vector.broadcast %20 : vector<1x8x1xf32> to vector<1x8x8xf32>
    %22 = arith.subf %18, %21 : vector<1x8x8xf32>
    %23 = math.exp %22 : vector<1x8x8xf32>
    %cst_7 = arith.constant dense<0.000000e+00> : vector<1x8xf32>
    %24 = vector.multi_reduction <add>, %23, %cst_7 [2] : vector<1x8x8xf32> to vector<1x8xf32>
    %25 = vector.shape_cast %24 : vector<1x8xf32> to vector<1x8x1xf32>
    %26 = tpu.reciprocal %25 {approx = true} : vector<1x8x1xf32> -> vector<1x8x1xf32>
    %27 = vector.broadcast %26 : vector<1x8x1xf32> to vector<1x8x8xf32>
    %28 = arith.mulf %23, %27 : vector<1x8x8xf32>
    %29 = arith.truncf %28 : vector<1x8x8xf32> to vector<1x8x8xbf16>
    "tpu.trace_start"() <{level = 10 : i32, message = "bqk,bkd->bqd"}> : () -> ()
    %cst_8 = arith.constant dense<0.000000e+00> : vector<1x8x4xf32>
    %30 = tpu.matmul %29, %17, %cst_8 {dimension_numbers = #tpu.dot_dimension_numbers<[2], [1], [1], [2], [0, 0, 0, 1, 1, 2], [0], [0]>} : vector<1x8x8xbf16>, vector<1x8x4xbf16>, vector<1x8x4xf32> -> vector<1x8x4xf32>
    "tpu.trace_stop"() : () -> ()
    %31 = vector.shape_cast %30 : vector<1x8x4xf32> to vector<8x4xf32>
    %32 = arith.truncf %31 : vector<8x4xf32> to vector<8x4xbf16>
    %c0_9 = arith.constant 0 : index
    %c0_10 = arith.constant 0 : index
    %33 = vector.load %arg6[%c0_9, %c0_10] : memref<8x32xbf16, #tpu.memory_space<vmem>>, vector<8x4xbf16>
    tpu.vector_store %arg6[%c0_9, %c0_10], %32 {strides = array<i32>} : memref<8x32xbf16, #tpu.memory_space<vmem>>, vector<8x4xbf16>,
    %34 = vector.extract_strided_slice %8 {offsets = [0, 0, 4], sizes = [1, 8, 4], strides = [1, 1, 1]} : vector<1x8x32xbf16> to vector<1x8x4xbf16>
    %35 = vector.extract_strided_slice %11 {offsets = [0, 0, 4], sizes = [1, 8, 4], strides = [1, 1, 1]} : vector<1x8x32xbf16> to vector<1x8x4xbf16>
    %36 = vector.extract_strided_slice %14 {offsets = [0, 0, 4], sizes = [1, 8, 4], strides = [1, 1, 1]} : vector<1x8x32xbf16> to vector<1x8x4xbf16>
    "tpu.trace_start"() <{level = 10 : i32, message = "bqd,bkd->bqk"}> : () -> ()
    %cst_11 = arith.constant dense<0.000000e+00> : vector<1x8x8xf32>
    %37 = tpu.matmul %34, %35, %cst_11 {dimension_numbers = #tpu.dot_dimension_numbers<[2], [2], [1], [1], [0, 0, 0, 1, 1, 1], [0], [0]>} : vector<1x8x4xbf16>, vector<1x8x4xbf16>, vector<1x8x8xf32> -> vector<1x8x8xf32>
    "tpu.trace_stop"() : () -> ()
    %cst_12 = arith.constant dense<0xFF800000> : vector<1x8xf32>
    %38 = vector.multi_reduction <maximumf>, %37, %cst_12 [2] : vector<1x8x8xf32> to vector<1x8xf32>
    %39 = vector.shape_cast %38 : vector<1x8xf32> to vector<1x8x1xf32>
    %40 = vector.broadcast %39 : vector<1x8x1xf32> to vector<1x8x8xf32>
    %41 = arith.subf %37, %40 : vector<1x8x8xf32>
    %42 = math.exp %41 : vector<1x8x8xf32>
    %cst_13 = arith.constant dense<0.000000e+00> : vector<1x8xf32>
    %43 = vector.multi_reduction <add>, %42, %cst_13 [2] : vector<1x8x8xf32> to vector<1x8xf32>
    %44 = vector.shape_cast %43 : vector<1x8xf32> to vector<1x8x1xf32>
    %45 = tpu.reciprocal %44 {approx = true} : vector<1x8x1xf32> -> vector<1x8x1xf32>
    %46 = vector.broadcast %45 : vector<1x8x1xf32> to vector<1x8x8xf32>
    %47 = arith.mulf %42, %46 : vector<1x8x8xf32>
    %48 = arith.truncf %47 : vector<1x8x8xf32> to vector<1x8x8xbf16>
    "tpu.trace_start"() <{level = 10 : i32, message = "bqk,bkd->bqd"}> : () -> ()
    %cst_14 = arith.constant dense<0.000000e+00> : vector<1x8x4xf32>
    %49 = tpu.matmul %48, %36, %cst_14 {dimension_numbers = #tpu.dot_dimension_numbers<[2], [1], [1], [2], [0, 0, 0, 1, 1, 2], [0], [0]>} : vector<1x8x8xbf16>, vector<1x8x4xbf16>, vector<1x8x4xf32> -> vector<1x8x4xf32>
    "tpu.trace_stop"() : () -> ()
    %50 = vector.shape_cast %49 : vector<1x8x4xf32> to vector<8x4xf32>
    %51 = arith.truncf %50 : vector<8x4xf32> to vector<8x4xbf16>
    %c0_15 = arith.constant 0 : index
    %c4 = arith.constant 4 : index
    %52 = vector.load %arg6[%c0_15, %c4] : memref<8x32xbf16, #tpu.memory_space<vmem>>, vector<8x4xbf16>
    tpu.vector_store %arg6[%c0_15, %c4], %51 {strides = array<i32>} : memref<8x32xbf16, #tpu.memory_space<vmem>>, vector<8x4xbf16>,
    %53 = vector.extract_strided_slice %8 {offsets = [0, 0, 8], sizes = [1, 8, 4], strides = [1, 1, 1]} : vector<1x8x32xbf16> to vector<1x8x4xbf16>
    %54 = vector.extract_strided_slice %11 {offsets = [0, 0, 8], sizes = [1, 8, 4], strides = [1, 1, 1]} : vector<1x8x32xbf16> to vector<1x8x4xbf16>
    %55 = vector.extract_strided_slice %14 {offsets = [0, 0, 8], sizes = [1, 8, 4], strides = [1, 1, 1]} : vector<1x8x32xbf16> to vector<1x8x4xbf16>
    "tpu.trace_start"() <{level = 10 : i32, message = "bqd,bkd->bqk"}> : () -> ()
    %cst_16 = arith.constant dense<0.000000e+00> : vector<1x8x8xf32>
    %56 = tpu.matmul %53, %54, %cst_16 {dimension_numbers = #tpu.dot_dimension_numbers<[2], [2], [1], [1], [0, 0, 0, 1, 1, 1], [0], [0]>} : vector<1x8x4xbf16>, vector<1x8x4xbf16>, vector<1x8x8xf32> -> vector<1x8x8xf32>
    "tpu.trace_stop"() : () -> ()
    %cst_17 = arith.constant dense<0xFF800000> : vector<1x8xf32>
    %57 = vector.multi_reduction <maximumf>, %56, %cst_17 [2] : vector<1x8x8xf32> to vector<1x8xf32>
    %58 = vector.shape_cast %57 : vector<1x8xf32> to vector<1x8x1xf32>
    %59 = vector.broadcast %58 : vector<1x8x1xf32> to vector<1x8x8xf32>
    %60 = arith.subf %56, %59 : vector<1x8x8xf32>
    %61 = math.exp %60 : vector<1x8x8xf32>
    %cst_18 = arith.constant dense<0.000000e+00> : vector<1x8xf32>
    %62 = vector.multi_reduction <add>, %61, %cst_18 [2] : vector<1x8x8xf32> to vector<1x8xf32>
    %63 = vector.shape_cast %62 : vector<1x8xf32> to vector<1x8x1xf32>
    %64 = tpu.reciprocal %63 {approx = true} : vector<1x8x1xf32> -> vector<1x8x1xf32>
    %65 = vector.broadcast %64 : vector<1x8x1xf32> to vector<1x8x8xf32>
    %66 = arith.mulf %61, %65 : vector<1x8x8xf32>
    %67 = arith.truncf %66 : vector<1x8x8xf32> to vector<1x8x8xbf16>
    "tpu.trace_start"() <{level = 10 : i32, message = "bqk,bkd->bqd"}> : () -> ()
    %cst_19 = arith.constant dense<0.000000e+00> : vector<1x8x4xf32>
    %68 = tpu.matmul %67, %55, %cst_19 {dimension_numbers = #tpu.dot_dimension_numbers<[2], [1], [1], [2], [0, 0, 0, 1, 1, 2], [0], [0]>} : vector<1x8x8xbf16>, vector<1x8x4xbf16>, vector<1x8x4xf32> -> vector<1x8x4xf32>
    "tpu.trace_stop"() : () -> ()
    %69 = vector.shape_cast %68 : vector<1x8x4xf32> to vector<8x4xf32>
    %70 = arith.truncf %69 : vector<8x4xf32> to vector<8x4xbf16>
    %c0_20 = arith.constant 0 : index
    %c8 = arith.constant 8 : index
    %71 = vector.load %arg6[%c0_20, %c8] : memref<8x32xbf16, #tpu.memory_space<vmem>>, vector<8x4xbf16>
    tpu.vector_store %arg6[%c0_20, %c8], %70 {strides = array<i32>} : memref<8x32xbf16, #tpu.memory_space<vmem>>, vector<8x4xbf16>,
    %72 = vector.extract_strided_slice %8 {offsets = [0, 0, 12], sizes = [1, 8, 4], strides = [1, 1, 1]} : vector<1x8x32xbf16> to vector<1x8x4xbf16>
    %73 = vector.extract_strided_slice %11 {offsets = [0, 0, 12], sizes = [1, 8, 4], strides = [1, 1, 1]} : vector<1x8x32xbf16> to vector<1x8x4xbf16>
    %74 = vector.extract_strided_slice %14 {offsets = [0, 0, 12], sizes = [1, 8, 4], strides = [1, 1, 1]} : vector<1x8x32xbf16> to vector<1x8x4xbf16>
    "tpu.trace_start"() <{level = 10 : i32, message = "bqd,bkd->bqk"}> : () -> ()
    %cst_21 = arith.constant dense<0.000000e+00> : vector<1x8x8xf32>
    %75 = tpu.matmul %72, %73, %cst_21 {dimension_numbers = #tpu.dot_dimension_numbers<[2], [2], [1], [1], [0, 0, 0, 1, 1, 1], [0], [0]>} : vector<1x8x4xbf16>, vector<1x8x4xbf16>, vector<1x8x8xf32> -> vector<1x8x8xf32>
    "tpu.trace_stop"() : () -> ()
    %cst_22 = arith.constant dense<0xFF800000> : vector<1x8xf32>
    %76 = vector.multi_reduction <maximumf>, %75, %cst_22 [2] : vector<1x8x8xf32> to vector<1x8xf32>
    %77 = vector.shape_cast %76 : vector<1x8xf32> to vector<1x8x1xf32>
    %78 = vector.broadcast %77 : vector<1x8x1xf32> to vector<1x8x8xf32>
    %79 = arith.subf %75, %78 : vector<1x8x8xf32>
    %80 = math.exp %79 : vector<1x8x8xf32>
    %cst_23 = arith.constant dense<0.000000e+00> : vector<1x8xf32>
    %81 = vector.multi_reduction <add>, %80, %cst_23 [2] : vector<1x8x8xf32> to vector<1x8xf32>
    %82 = vector.shape_cast %81 : vector<1x8xf32> to vector<1x8x1xf32>
    %83 = tpu.reciprocal %82 {approx = true} : vector<1x8x1xf32> -> vector<1x8x1xf32>
    %84 = vector.broadcast %83 : vector<1x8x1xf32> to vector<1x8x8xf32>
    %85 = arith.mulf %80, %84 : vector<1x8x8xf32>
    %86 = arith.truncf %85 : vector<1x8x8xf32> to vector<1x8x8xbf16>
    "tpu.trace_start"() <{level = 10 : i32, message = "bqk,bkd->bqd"}> : () -> ()
    %cst_24 = arith.constant dense<0.000000e+00> : vector<1x8x4xf32>
    %87 = tpu.matmul %86, %74, %cst_24 {dimension_numbers = #tpu.dot_dimension_numbers<[2], [1], [1], [2], [0, 0, 0, 1, 1, 2], [0], [0]>} : vector<1x8x8xbf16>, vector<1x8x4xbf16>, vector<1x8x4xf32> -> vector<1x8x4xf32>
    "tpu.trace_stop"() : () -> ()
    %88 = vector.shape_cast %87 : vector<1x8x4xf32> to vector<8x4xf32>
    %89 = arith.truncf %88 : vector<8x4xf32> to vector<8x4xbf16>
    %c0_25 = arith.constant 0 : index
    %c12 = arith.constant 12 : index
    %90 = vector.load %arg6[%c0_25, %c12] : memref<8x32xbf16, #tpu.memory_space<vmem>>, vector<8x4xbf16>
    tpu.vector_store %arg6[%c0_25, %c12], %89 {strides = array<i32>} : memref<8x32xbf16, #tpu.memory_space<vmem>>, vector<8x4xbf16>,
    %91 = vector.extract_strided_slice %8 {offsets = [0, 0, 16], sizes = [1, 8, 4], strides = [1, 1, 1]} : vector<1x8x32xbf16> to vector<1x8x4xbf16>
    %92 = vector.extract_strided_slice %11 {offsets = [0, 0, 16], sizes = [1, 8, 4], strides = [1, 1, 1]} : vector<1x8x32xbf16> to vector<1x8x4xbf16>
    %93 = vector.extract_strided_slice %14 {offsets = [0, 0, 16], sizes = [1, 8, 4], strides = [1, 1, 1]} : vector<1x8x32xbf16> to vector<1x8x4xbf16>
    "tpu.trace_start"() <{level = 10 : i32, message = "bqd,bkd->bqk"}> : () -> ()
    %cst_26 = arith.constant dense<0.000000e+00> : vector<1x8x8xf32>
    %94 = tpu.matmul %91, %92, %cst_26 {dimension_numbers = #tpu.dot_dimension_numbers<[2], [2], [1], [1], [0, 0, 0, 1, 1, 1], [0], [0]>} : vector<1x8x4xbf16>, vector<1x8x4xbf16>, vector<1x8x8xf32> -> vector<1x8x8xf32>
    "tpu.trace_stop"() : () -> ()
    %cst_27 = arith.constant dense<0xFF800000> : vector<1x8xf32>
    %95 = vector.multi_reduction <maximumf>, %94, %cst_27 [2] : vector<1x8x8xf32> to vector<1x8xf32>
    %96 = vector.shape_cast %95 : vector<1x8xf32> to vector<1x8x1xf32>
    %97 = vector.broadcast %96 : vector<1x8x1xf32> to vector<1x8x8xf32>
    %98 = arith.subf %94, %97 : vector<1x8x8xf32>
    %99 = math.exp %98 : vector<1x8x8xf32>
    %cst_28 = arith.constant dense<0.000000e+00> : vector<1x8xf32>
    %100 = vector.multi_reduction <add>, %99, %cst_28 [2] : vector<1x8x8xf32> to vector<1x8xf32>
    %101 = vector.shape_cast %100 : vector<1x8xf32> to vector<1x8x1xf32>
    %102 = tpu.reciprocal %101 {approx = true} : vector<1x8x1xf32> -> vector<1x8x1xf32>
    %103 = vector.broadcast %102 : vector<1x8x1xf32> to vector<1x8x8xf32>
    %104 = arith.mulf %99, %103 : vector<1x8x8xf32>
    %105 = arith.truncf %104 : vector<1x8x8xf32> to vector<1x8x8xbf16>
    "tpu.trace_start"() <{level = 10 : i32, message = "bqk,bkd->bqd"}> : () -> ()
    %cst_29 = arith.constant dense<0.000000e+00> : vector<1x8x4xf32>
    %106 = tpu.matmul %105, %93, %cst_29 {dimension_numbers = #tpu.dot_dimension_numbers<[2], [1], [1], [2], [0, 0, 0, 1, 1, 2], [0], [0]>} : vector<1x8x8xbf16>, vector<1x8x4xbf16>, vector<1x8x4xf32> -> vector<1x8x4xf32>
    "tpu.trace_stop"() : () -> ()
    %107 = vector.shape_cast %106 : vector<1x8x4xf32> to vector<8x4xf32>
    %108 = arith.truncf %107 : vector<8x4xf32> to vector<8x4xbf16>
    %c0_30 = arith.constant 0 : index
    %c16 = arith.constant 16 : index
    %109 = vector.load %arg6[%c0_30, %c16] : memref<8x32xbf16, #tpu.memory_space<vmem>>, vector<8x4xbf16>
    tpu.vector_store %arg6[%c0_30, %c16], %108 {strides = array<i32>} : memref<8x32xbf16, #tpu.memory_space<vmem>>, vector<8x4xbf16>,
    %110 = vector.extract_strided_slice %8 {offsets = [0, 0, 20], sizes = [1, 8, 4], strides = [1, 1, 1]} : vector<1x8x32xbf16> to vector<1x8x4xbf16>
    %111 = vector.extract_strided_slice %11 {offsets = [0, 0, 20], sizes = [1, 8, 4], strides = [1, 1, 1]} : vector<1x8x32xbf16> to vector<1x8x4xbf16>
    %112 = vector.extract_strided_slice %14 {offsets = [0, 0, 20], sizes = [1, 8, 4], strides = [1, 1, 1]} : vector<1x8x32xbf16> to vector<1x8x4xbf16>
    "tpu.trace_start"() <{level = 10 : i32, message = "bqd,bkd->bqk"}> : () -> ()
    %cst_31 = arith.constant dense<0.000000e+00> : vector<1x8x8xf32>
    %113 = tpu.matmul %110, %111, %cst_31 {dimension_numbers = #tpu.dot_dimension_numbers<[2], [2], [1], [1], [0, 0, 0, 1, 1, 1], [0], [0]>} : vector<1x8x4xbf16>, vector<1x8x4xbf16>, vector<1x8x8xf32> -> vector<1x8x8xf32>
    "tpu.trace_stop"() : () -> ()
    %cst_32 = arith.constant dense<0xFF800000> : vector<1x8xf32>
    %114 = vector.multi_reduction <maximumf>, %113, %cst_32 [2] : vector<1x8x8xf32> to vector<1x8xf32>
    %115 = vector.shape_cast %114 : vector<1x8xf32> to vector<1x8x1xf32>
    %116 = vector.broadcast %115 : vector<1x8x1xf32> to vector<1x8x8xf32>
    %117 = arith.subf %113, %116 : vector<1x8x8xf32>
    %118 = math.exp %117 : vector<1x8x8xf32>
    %cst_33 = arith.constant dense<0.000000e+00> : vector<1x8xf32>
    %119 = vector.multi_reduction <add>, %118, %cst_33 [2] : vector<1x8x8xf32> to vector<1x8xf32>
    %120 = vector.shape_cast %119 : vector<1x8xf32> to vector<1x8x1xf32>
    %121 = tpu.reciprocal %120 {approx = true} : vector<1x8x1xf32> -> vector<1x8x1xf32>
    %122 = vector.broadcast %121 : vector<1x8x1xf32> to vector<1x8x8xf32>
    %123 = arith.mulf %118, %122 : vector<1x8x8xf32>
    %124 = arith.truncf %123 : vector<1x8x8xf32> to vector<1x8x8xbf16>
    "tpu.trace_start"() <{level = 10 : i32, message = "bqk,bkd->bqd"}> : () -> ()
    %cst_34 = arith.constant dense<0.000000e+00> : vector<1x8x4xf32>
    %125 = tpu.matmul %124, %112, %cst_34 {dimension_numbers = #tpu.dot_dimension_numbers<[2], [1], [1], [2], [0, 0, 0, 1, 1, 2], [0], [0]>} : vector<1x8x8xbf16>, vector<1x8x4xbf16>, vector<1x8x4xf32> -> vector<1x8x4xf32>
    "tpu.trace_stop"() : () -> ()
    %126 = vector.shape_cast %125 : vector<1x8x4xf32> to vector<8x4xf32>
    %127 = arith.truncf %126 : vector<8x4xf32> to vector<8x4xbf16>
    %c0_35 = arith.constant 0 : index
    %c20 = arith.constant 20 : index
    %128 = vector.load %arg6[%c0_35, %c20] : memref<8x32xbf16, #tpu.memory_space<vmem>>, vector<8x4xbf16>
    tpu.vector_store %arg6[%c0_35, %c20], %127 {strides = array<i32>} : memref<8x32xbf16, #tpu.memory_space<vmem>>, vector<8x4xbf16>,
    %129 = vector.extract_strided_slice %8 {offsets = [0, 0, 24], sizes = [1, 8, 4], strides = [1, 1, 1]} : vector<1x8x32xbf16> to vector<1x8x4xbf16>
    %130 = vector.extract_strided_slice %11 {offsets = [0, 0, 24], sizes = [1, 8, 4], strides = [1, 1, 1]} : vector<1x8x32xbf16> to vector<1x8x4xbf16>
    %131 = vector.extract_strided_slice %14 {offsets = [0, 0, 24], sizes = [1, 8, 4], strides = [1, 1, 1]} : vector<1x8x32xbf16> to vector<1x8x4xbf16>
    "tpu.trace_start"() <{level = 10 : i32, message = "bqd,bkd->bqk"}> : () -> ()
    %cst_36 = arith.constant dense<0.000000e+00> : vector<1x8x8xf32>
    %132 = tpu.matmul %129, %130, %cst_36 {dimension_numbers = #tpu.dot_dimension_numbers<[2], [2], [1], [1], [0, 0, 0, 1, 1, 1], [0], [0]>} : vector<1x8x4xbf16>, vector<1x8x4xbf16>, vector<1x8x8xf32> -> vector<1x8x8xf32>
    "tpu.trace_stop"() : () -> ()
    %cst_37 = arith.constant dense<0xFF800000> : vector<1x8xf32>
    %133 = vector.multi_reduction <maximumf>, %132, %cst_37 [2] : vector<1x8x8xf32> to vector<1x8xf32>
    %134 = vector.shape_cast %133 : vector<1x8xf32> to vector<1x8x1xf32>
    %135 = vector.broadcast %134 : vector<1x8x1xf32> to vector<1x8x8xf32>
    %136 = arith.subf %132, %135 : vector<1x8x8xf32>
    %137 = math.exp %136 : vector<1x8x8xf32>
    %cst_38 = arith.constant dense<0.000000e+00> : vector<1x8xf32>
    %138 = vector.multi_reduction <add>, %137, %cst_38 [2] : vector<1x8x8xf32> to vector<1x8xf32>
    %139 = vector.shape_cast %138 : vector<1x8xf32> to vector<1x8x1xf32>
    %140 = tpu.reciprocal %139 {approx = true} : vector<1x8x1xf32> -> vector<1x8x1xf32>
    %141 = vector.broadcast %140 : vector<1x8x1xf32> to vector<1x8x8xf32>
    %142 = arith.mulf %137, %141 : vector<1x8x8xf32>
    %143 = arith.truncf %142 : vector<1x8x8xf32> to vector<1x8x8xbf16>
    "tpu.trace_start"() <{level = 10 : i32, message = "bqk,bkd->bqd"}> : () -> ()
    %cst_39 = arith.constant dense<0.000000e+00> : vector<1x8x4xf32>
    %144 = tpu.matmul %143, %131, %cst_39 {dimension_numbers = #tpu.dot_dimension_numbers<[2], [1], [1], [2], [0, 0, 0, 1, 1, 2], [0], [0]>} : vector<1x8x8xbf16>, vector<1x8x4xbf16>, vector<1x8x4xf32> -> vector<1x8x4xf32>
    "tpu.trace_stop"() : () -> ()
    %145 = vector.shape_cast %144 : vector<1x8x4xf32> to vector<8x4xf32>
    %146 = arith.truncf %145 : vector<8x4xf32> to vector<8x4xbf16>
    %c0_40 = arith.constant 0 : index
    %c24 = arith.constant 24 : index
    %147 = vector.load %arg6[%c0_40, %c24] : memref<8x32xbf16, #tpu.memory_space<vmem>>, vector<8x4xbf16>
    tpu.vector_store %arg6[%c0_40, %c24], %146 {strides = array<i32>} : memref<8x32xbf16, #tpu.memory_space<vmem>>, vector<8x4xbf16>,
    %148 = vector.extract_strided_slice %8 {offsets = [0, 0, 28], sizes = [1, 8, 4], strides = [1, 1, 1]} : vector<1x8x32xbf16> to vector<1x8x4xbf16>
    %149 = vector.extract_strided_slice %11 {offsets = [0, 0, 28], sizes = [1, 8, 4], strides = [1, 1, 1]} : vector<1x8x32xbf16> to vector<1x8x4xbf16>
    %150 = vector.extract_strided_slice %14 {offsets = [0, 0, 28], sizes = [1, 8, 4], strides = [1, 1, 1]} : vector<1x8x32xbf16> to vector<1x8x4xbf16>
    "tpu.trace_start"() <{level = 10 : i32, message = "bqd,bkd->bqk"}> : () -> ()
    %cst_41 = arith.constant dense<0.000000e+00> : vector<1x8x8xf32>
    %151 = tpu.matmul %148, %149, %cst_41 {dimension_numbers = #tpu.dot_dimension_numbers<[2], [2], [1], [1], [0, 0, 0, 1, 1, 1], [0], [0]>} : vector<1x8x4xbf16>, vector<1x8x4xbf16>, vector<1x8x8xf32> -> vector<1x8x8xf32>
    "tpu.trace_stop"() : () -> ()
    %cst_42 = arith.constant dense<0xFF800000> : vector<1x8xf32>
    %152 = vector.multi_reduction <maximumf>, %151, %cst_42 [2] : vector<1x8x8xf32> to vector<1x8xf32>
    %153 = vector.shape_cast %152 : vector<1x8xf32> to vector<1x8x1xf32>
    %154 = vector.broadcast %153 : vector<1x8x1xf32> to vector<1x8x8xf32>
    %155 = arith.subf %151, %154 : vector<1x8x8xf32>
    %156 = math.exp %155 : vector<1x8x8xf32>
    %cst_43 = arith.constant dense<0.000000e+00> : vector<1x8xf32>
    %157 = vector.multi_reduction <add>, %156, %cst_43 [2] : vector<1x8x8xf32> to vector<1x8xf32>
    %158 = vector.shape_cast %157 : vector<1x8xf32> to vector<1x8x1xf32>
    %159 = tpu.reciprocal %158 {approx = true} : vector<1x8x1xf32> -> vector<1x8x1xf32>
    %160 = vector.broadcast %159 : vector<1x8x1xf32> to vector<1x8x8xf32>
    %161 = arith.mulf %156, %160 : vector<1x8x8xf32>
    %162 = arith.truncf %161 : vector<1x8x8xf32> to vector<1x8x8xbf16>
    "tpu.trace_start"() <{level = 10 : i32, message = "bqk,bkd->bqd"}> : () -> ()
    %cst_44 = arith.constant dense<0.000000e+00> : vector<1x8x4xf32>
    %163 = tpu.matmul %162, %150, %cst_44 {dimension_numbers = #tpu.dot_dimension_numbers<[2], [1], [1], [2], [0, 0, 0, 1, 1, 2], [0], [0]>} : vector<1x8x8xbf16>, vector<1x8x4xbf16>, vector<1x8x4xf32> -> vector<1x8x4xf32>
    "tpu.trace_stop"() : () -> ()
    %164 = vector.shape_cast %163 : vector<1x8x4xf32> to vector<8x4xf32>
    %165 = arith.truncf %164 : vector<8x4xf32> to vector<8x4xbf16>
    %c0_45 = arith.constant 0 : index
    %c28 = arith.constant 28 : index
    %166 = vector.load %arg6[%c0_45, %c28] : memref<8x32xbf16, #tpu.memory_space<vmem>>, vector<8x4xbf16>
    tpu.vector_store %arg6[%c0_45, %c28], %165 {strides = array<i32>} : memref<8x32xbf16, #tpu.memory_space<vmem>>, vector<8x4xbf16>,
    %c0_46 = arith.constant 0 : index
    %c0_47 = arith.constant 0 : index
    %167 = vector.load %arg4[%c0_46, %c0_47] : memref<1x32xf32, #tpu.memory_space<vmem>>, vector<1x32xf32>
    %c0_48 = arith.constant 0 : index
    %c0_49 = arith.constant 0 : index
    %168 = vector.load %arg6[%c0_48, %c0_49] : memref<8x32xbf16, #tpu.memory_space<vmem>>, vector<8x32xbf16>
    %c0_50 = arith.constant 0 : index
    %c0_51 = arith.constant 0 : index
    %169 = vector.load %arg3[%c0_50, %c0_51] : memref<32x32xbf16, #tpu.memory_space<vmem>>, vector<32x32xbf16>
    %cst_52 = arith.constant dense<0.000000e+00> : vector<8x32xf32>
    %170 = tpu.matmul %168, %169, %cst_52 {dimension_numbers = #tpu.dot_dimension_numbers<[1], [0], [0], [1], [0, 0, 1, 1], [], []>} : vector<8x32xbf16>, vector<32x32xbf16>, vector<8x32xf32> -> vector<8x32xf32>
    %171 = vector.broadcast %167 : vector<1x32xf32> to vector<8x32xf32>
    %172 = arith.addf %170, %171 : vector<8x32xf32>
    %173 = vector.shape_cast %172 : vector<8x32xf32> to vector<1x8x32xf32>
    %c0_53 = arith.constant 0 : index
    %c0_54 = arith.constant 0 : index
    %c0_55 = arith.constant 0 : index
    %174 = vector.load %arg5[%c0_53, %c0_54, %c0_55] : memref<1x8x32xf32, #tpu.memory_space<vmem>>, vector<1x8x32xf32>
    tpu.vector_store %arg5[%c0_53, %c0_54, %c0_55], %173 {strides = array<i32>} : memref<1x8x32xf32, #tpu.memory_space<vmem>>, vector<1x8x32xf32>,
    return
  }
  func.func @transform_0(%arg0: i32) -> (i32, i32, i32) {
    %c0_i32 = arith.constant 0 : i32
    %c0_i32_0 = arith.constant 0 : i32
    %c0_i32_1 = arith.constant 0 : i32
    return %arg0, %c0_i32, %c0_i32_0 : i32, i32, i32
  }
  func.func @transform_1(%arg0: i32) -> (i32, i32) {
    %c0_i32 = arith.constant 0 : i32
    %c0_i32_0 = arith.constant 0 : i32
    %c0_i32_1 = arith.constant 0 : i32
    return %c0_i32, %c0_i32_0 : i32, i32
  }
  func.func @transform_2(%arg0: i32) -> (i32, i32) {
    %c0_i32 = arith.constant 0 : i32
    %c0_i32_0 = arith.constant 0 : i32
    %c0_i32_1 = arith.constant 0 : i32
    return %c0_i32, %c0_i32_0 : i32, i32
  }
  func.func @transform_3(%arg0: i32) -> (i32, i32) {
    %c0_i32 = arith.constant 0 : i32
    %c0_i32_0 = arith.constant 0 : i32
    %c0_i32_1 = arith.constant 0 : i32
    return %c0_i32, %c0_i32_0 : i32, i32
  }
  func.func @transform_4(%arg0: i32) -> (i32, i32, i32) {
    %c0_i32 = arith.constant 0 : i32
    %c0_i32_0 = arith.constant 0 : i32
    %c0_i32_1 = arith.constant 0 : i32
    return %arg0, %c0_i32, %c0_i32_0 : i32, i32, i32
  }
}

</mosaic_0001>

<llo_original>
// kernel: tpu_custom_call.1
$region0: #{tpu_custom_call.1}
  #allocation0 [shape = 'u32[]', space=smem, size = 0x4, offset = 0x4, fixed_abs, tag = 'smem constant byte address 0x4 - core index']
  #allocation1 [shape = 'u32[144,128]{1,0:T(1,128)}', space=vmem, size = 0x12000, scoped, tag = 'internal scratch']
  #allocation2 [shape = 'bf16[8,32]{1,0:T(8,128)(2,1)}', space=vmem, size = 0x800, scoped, tag = 'scratch operand']
  %s0 = inlined_call_operand.hbm [shape: bf16[2,8,32], index: 0, kind: input, shape index: {}]
  %s1 = inlined_call_operand.hbm [shape: bf16[32,96], index: 1, kind: input, shape index: {}]
  %s2 = inlined_call_operand.hbm [shape: bf16[32,32], index: 2, kind: input, shape index: {}]
  %s3 = inlined_call_operand.vmem [shape: f32[1,32], index: 3, kind: input, shape index: {}]
  %s4 = inlined_call_operand.hbm [shape: f32[2,8,32], index: 4, kind: output, shape index: {}]
  %s5 = sld [smem:[#allocation0]]
  $region61: #{tpu_custom_call.1} parent=0
    _
  %s7 = ssub.s32 1, %s5
  %s8 = scalar_select 0, %s7, %s5
  $region1: #{tpu_custom_call.1} parent=0
    #allocation3 [shape = 'u8[4096]{0}', space=vmem, size = 0x1000, scoped, tag = 'input window, operand 0']
    #allocation4 [shape = 's32[2]{0}', space=sflag, size = 0x8, scoped, tag = 'scoped memory for tpu_custom_call.1']
    #allocation5 [shape = 's32[2]{0}', space=sflag, size = 0x8, scoped, tag = 'scoped memory for tpu_custom_call.1']
    #allocation6 [shape = 'u8[8192]{0}', space=vmem, size = 0x2000, scoped, tag = 'input window, operand 1, single buffered']
    #allocation7 [shape = 's32[1]{0}', space=sflag, size = 0x4, scoped, tag = 'scoped memory for tpu_custom_call.1']
    #allocation8 [shape = 'u8[8192]{0}', space=vmem, size = 0x2000, scoped, tag = 'input window, operand 2, single buffered']
    #allocation9 [shape = 'u8[8192]{0}', space=vmem, size = 0x2000, scoped, tag = 'output window, operand 0']
    %9 = vsyncpa [#allocation4], 0
    %s10 = scalar_lea.sflag [#allocation4], 1
    %11 = vsyncpa %s10, 0
    %12 = vsyncpa [#allocation7], 0
    %13 = vsyncpa [#allocation5], 0
    %s14 = scalar_lea.sflag [#allocation5], 1
    %15 = vsyncpa %s14, 0
    loop: start=0, step=1, limit=4
    $region2: #{tpu_custom_call.1} parent=1 // loop_pre_header
      _
    $region3: #{tpu_custom_call.1} parent=1 // loop_header
      %s17 = sphi 0, %s21
      %p18 = scmp.ge.s32.totalorder %s17, 4
      %s27 = sphi 0, %s29
      %s30 = sphi 0, %s27
      %s31 = sphi 0, %s30
      %s47 = sphi 0, %s31
      %s51 = sphi 0, %s51
      %s53 = sphi 0, %s51
      %s54 = sphi 0, %s53
      %s68 = sphi 0, %s54
      %s72 = sphi 0, %s72
      %s74 = sphi 0, %s72
      %s75 = sphi 0, %s74
      %s89 = sphi 0, %s75
      %s93 = sphi 0, %s93
      %s95 = sphi 0, %s93
      %s96 = sphi 0, %s95
      %s110 = sphi 0, %s96
      %s116 = sphi 0, %s118
      %s119 = sphi 0, %s116
      %s120 = sphi 0, %s119
      %s136 = sphi 0, %s120
    $region4: #{tpu_custom_call.1} parent=1 // loop_header_branch
      %20 = sbr.rel (%p18) target = $region8
    $region5: #{tpu_custom_call.1} parent=1 // loop_body
      %s22 = ssub.s32 %s17, 1
      %s23 = ssub.s32 %s17, 2
      %s24 = sadd.s32 %s17, 1
      %s25 = ssub.s32 %s17, %s24
      %p26 = scmp.eq.s32.totalorder %s25, 0
      %s28 = sadd.s32 %s27, 1
      %s29 = scalar_select %p26, %s27, %s28
      %p32 = pneg %p26
      %p33 = scmp.eq.s32.totalorder %s17, 1
      %p34 = por %p32, %p33
      %p35 = scmp.ne.s32.totalorder %s27, %s30
      %p36 = scmp.eq.s32.totalorder %s17, 0
      %p37 = por %p35, %p36
      %p38 = scmp.ne.s32.totalorder %s27, %s30
      %p39 = scmp.eq.s32.totalorder %s22, 1
      %p40 = por %p38, %p39
      %p41 = scmp.ne.s32.totalorder %s30, %s31
      %p42 = scmp.eq.s32.totalorder %s22, 0
      %p43 = por %p41, %p42
      %p44 = scmp.ne.s32.totalorder %s30, %s31
      %p45 = scmp.eq.s32.totalorder %s23, 1
      %p46 = por %p44, %p45
      %p48 = scmp.ne.s32.totalorder %s31, %s47
      %p49 = scmp.eq.s32.totalorder %s23, 0
      %p50 = por %p48, %p49
      %s52 = sadd.s32 %s51, 1
      %p55 = scmp.eq.s32.totalorder %s17, 1
      %p56 = scmp.ne.s32.totalorder %s51, %s53
      %p57 = scmp.eq.s32.totalorder %s17, 0
      %p58 = por %p56, %p57
      %p59 = scmp.ne.s32.totalorder %s51, %s53
      %p60 = scmp.eq.s32.totalorder %s22, 1
      %p61 = por %p59, %p60
      %p62 = scmp.ne.s32.totalorder %s53, %s54
      %p63 = scmp.eq.s32.totalorder %s22, 0
      %p64 = por %p62, %p63
      %p65 = scmp.ne.s32.totalorder %s53, %s54
      %p66 = scmp.eq.s32.totalorder %s23, 1
      %p67 = por %p65, %p66
      %p69 = scmp.ne.s32.totalorder %s54, %s68
      %p70 = scmp.eq.s32.totalorder %s23, 0
      %p71 = por %p69, %p70
      %s73 = sadd.s32 %s72, 1
      %p76 = scmp.eq.s32.totalorder %s17, 1
      %p77 = scmp.ne.s32.totalorder %s72, %s74
      %p78 = scmp.eq.s32.totalorder %s17, 0
      %p79 = por %p77, %p78
      %p80 = scmp.ne.s32.totalorder %s72, %s74
      %p81 = scmp.eq.s32.totalorder %s22, 1
      %p82 = por %p80, %p81
      %p83 = scmp.ne.s32.totalorder %s74, %s75
      %p84 = scmp.eq.s32.totalorder %s22, 0
      %p85 = por %p83, %p84
      %p86 = scmp.ne.s32.totalorder %s74, %s75
      %p87 = scmp.eq.s32.totalorder %s23, 1
      %p88 = por %p86, %p87
      %p90 = scmp.ne.s32.totalorder %s75, %s89
      %p91 = scmp.eq.s32.totalorder %s23, 0
      %p92 = por %p90, %p91
      %s94 = sadd.s32 %s93, 1
      %p97 = scmp.eq.s32.totalorder %s17, 1
      %p98 = scmp.ne.s32.totalorder %s93, %s95
      %p99 = scmp.eq.s32.totalorder %s17, 0
      %p100 = por %p98, %p99
      %p101 = scmp.ne.s32.totalorder %s93, %s95
      %p102 = scmp.eq.s32.totalorder %s22, 1
      %p103 = por %p101, %p102
      %p104 = scmp.ne.s32.totalorder %s95, %s96
      %p105 = scmp.eq.s32.totalorder %s22, 0
      %p106 = por %p104, %p105
      %p107 = scmp.ne.s32.totalorder %s95, %s96
      %p108 = scmp.eq.s32.totalorder %s23, 1
      %p109 = por %p107, %p108
      %p111 = scmp.ne.s32.totalorder %s96, %s110
      %p112 = scmp.eq.s32.totalorder %s23, 0
      %p113 = por %p111, %p112
      %s114 = ssub.s32 %s17, %s24
      %p115 = scmp.eq.s32.totalorder %s114, 0
      %s117 = sadd.s32 %s116, 1
      %s118 = scalar_select %p115, %s116, %s117
      %p121 = pneg %p115
      %p122 = scmp.eq.s32.totalorder %s17, 1
      %p123 = por %p121, %p122
      %p124 = scmp.ne.s32.totalorder %s116, %s119
      %p125 = scmp.eq.s32.totalorder %s17, 0
      %p126 = por %p124, %p125
      %p127 = scmp.ne.s32.totalorder %s116, %s119
      %p128 = scmp.eq.s32.totalorder %s22, 1
      %p129 = por %p127, %p128
      %p130 = scmp.ne.s32.totalorder %s119, %s120
      %p131 = scmp.eq.s32.totalorder %s22, 0
      %p132 = por %p130, %p131
      %p133 = scmp.ne.s32.totalorder %s119, %s120
      %p134 = scmp.eq.s32.totalorder %s23, 1
      %p135 = por %p133, %p134
      %p137 = scmp.ne.s32.totalorder %s120, %s136
      %p138 = scmp.eq.s32.totalorder %s23, 0
      %p139 = por %p137, %p138
      %p140 = scmp.le.s32.totalorder 1, %s17
      %p141 = scmp.lt.s32.totalorder %s17, 3
      %p142 = pnand %p140, %p141
      %p143 = pneg %p142
      // Predicated region
      $region9: #{tpu_custom_call.1} parent=5 // pred_check
        _
      $region10: #{tpu_custom_call.1} parent=5 // pred_check_branch
        %145 = sbr.rel (%p142) target = $region12
      $region11: #{tpu_custom_call.1} parent=5 // pred_region
        %s146 = ssub.s32 %s17, 1
        // Predicated region
        $region13: #{tpu_custom_call.1} parent=11 // pred_check
          %p147 = pneg %p64
        $region14: #{tpu_custom_call.1} parent=11 // pred_check_branch
          %149 = sbr.rel (%p147) target = $region16
        $region15: #{tpu_custom_call.1} parent=11 // pred_region
          %s151 = ssub.s32 256, 256
          %152 = vsyncadd [#allocation7], %s151
          %s153 = sshll.u32 [#allocation6], 4
          %s154 = int_to_ptr.vmem [resolvable:$true] %s153
          %159 = dma.hbm_to_vmem [thread:$0]  %s1, 256, %s154, [#allocation7], 64, 64, 4
        $region16: #{tpu_custom_call.1} parent=11 // pred_fallthru
          _
        // Predicated region
        $region17: #{tpu_custom_call.1} parent=11 // pred_check
          %p160 = pneg %p85
        $region18: #{tpu_custom_call.1} parent=11 // pred_check_branch
          %162 = sbr.rel (%p160) target = $region20
        $region19: #{tpu_custom_call.1} parent=11 // pred_region
          %s164 = ssub.s32 256, 256
          %165 = vsyncadd [#allocation7], %s164
          %s166 = sshll.u32 [#allocation8], 4
          %s167 = int_to_ptr.vmem [resolvable:$true] %s166
          %172 = dma.hbm_to_vmem [thread:$0]  %s2, 256, %s167, [#allocation7], 64, 64, 4
        $region20: #{tpu_custom_call.1} parent=11 // pred_fallthru
          _
        // Predicated region
        $region21: #{tpu_custom_call.1} parent=11 // pred_check
          %p173 = pneg %p106
        $region22: #{tpu_custom_call.1} parent=11 // pred_check_branch
          %175 = sbr.rel (%p173) target = $region24
        $region23: #{tpu_custom_call.1} parent=11 // pred_region
          _
        $region24: #{tpu_custom_call.1} parent=11 // pred_fallthru
          _
      $region12: #{tpu_custom_call.1} parent=5 // pred_fallthru
        _
      %p176 = scmp.lt.s32.totalorder %s17, 2
      // Predicated region
      $region25: #{tpu_custom_call.1} parent=5 // pred_check
        %p177 = pneg %p176
      $region26: #{tpu_custom_call.1} parent=5 // pred_check_branch
        %179 = sbr.rel (%p177) target = $region28
      $region27: #{tpu_custom_call.1} parent=5 // pred_region
        // Predicated region
        $region29: #{tpu_custom_call.1} parent=27 // pred_check
          %p180 = pneg %p37
        $region30: #{tpu_custom_call.1} parent=27 // pred_check_branch
          %182 = sbr.rel (%p180) target = $region32
        $region31: #{tpu_custom_call.1} parent=27 // pred_region
          %s183 = sand.u32 %s27, 1
          %s184 = scalar_lea.sflag [#allocation4], %s183
          %s185 = sand.u32 %s27, 1
          %s186 = smul.addr %s185, 4
          %s187 = scalar_lea.vmem [#allocation3], %s186
          %s189 = ssub.s32 64, 64
          %190 = vsyncadd %s184, %s189
          %s191 = smul.addr %s17, 64
          %s192 = scalar_lea.hbm %s0, %s191
          %s194 = sshll.u32 %s187, 4
          %s195 = int_to_ptr.vmem [resolvable:$true] %s194
          %197 = dma.hbm_to_vmem [thread:$0]  %s192, 64, %s195, %s184
        $region32: #{tpu_custom_call.1} parent=27 // pred_fallthru
          _
      $region28: #{tpu_custom_call.1} parent=5 // pred_fallthru
        _
      %p198 = scmp.le.s32.totalorder 1, %s17
      %p199 = scmp.lt.s32.totalorder %s17, 3
      %p200 = pnand %p198, %p199
      %p201 = pneg %p200
      // Predicated region
      $region33: #{tpu_custom_call.1} parent=5 // pred_check
        _
      $region34: #{tpu_custom_call.1} parent=5 // pred_check_branch
        %203 = sbr.rel (%p200) target = $region36
      $region35: #{tpu_custom_call.1} parent=5 // pred_region
        %s204 = ssub.s32 %s17, 1
        %s205 = sand.u32 %s30, 1
        %s206 = scalar_lea.sflag [#allocation4], %s205
        %s207 = sand.u32 %s30, 1
        %s208 = smul.addr %s207, 4
        %s209 = scalar_lea.vmem [#allocation3], %s208
        // Predicated region
        $region37: #{tpu_custom_call.1} parent=35 // pred_check
          %p210 = pneg %p43
        $region38: #{tpu_custom_call.1} parent=35 // pred_check_branch
          %212 = sbr.rel (%p210) target = $region40
        $region39: #{tpu_custom_call.1} parent=35 // pred_region
          %213 = dma.done %s206, 64
        $region40: #{tpu_custom_call.1} parent=35 // pred_fallthru
          _
        // Predicated region
        $region41: #{tpu_custom_call.1} parent=35 // pred_check
          %p214 = pneg %p64
        $region42: #{tpu_custom_call.1} parent=35 // pred_check_branch
          %216 = sbr.rel (%p214) target = $region44
        $region43: #{tpu_custom_call.1} parent=35 // pred_region
          %217 = dma.done [#allocation7], 256
        $region44: #{tpu_custom_call.1} parent=35 // pred_fallthru
          _
        // Predicated region
        $region45: #{tpu_custom_call.1} parent=35 // pred_check
          %p218 = pneg %p85
        $region46: #{tpu_custom_call.1} parent=35 // pred_check_branch
          %220 = sbr.rel (%p218) target = $region48
        $region47: #{tpu_custom_call.1} parent=35 // pred_region
          %221 = dma.done [#allocation7], 256
        $region48: #{tpu_custom_call.1} parent=35 // pred_fallthru
          _
        %s222 = sand.u32 %s30, 1
        %s223 = scalar_lea.sflag [#allocation4], %s222
        %s224 = sand.u32 %s30, 1
        %s225 = smul.addr %s224, 4
        %s226 = scalar_lea.vmem [#allocation3], %s225
        %p227 = pneg %p43
        %p228 = pneg %p40
        %p229 = pneg %p64
        %p230 = pneg %p61
        %p231 = pneg %p85
        %p232 = pneg %p82
        %p233 = pneg %p106
        %p234 = pneg %p103
        %p235 = pneg %p132
        %p236 = pneg %p129
        %s237 = sand.u32 %s119, 1
        %s238 = scalar_lea.sflag [#allocation5], %s237
        %s239 = sand.u32 %s119, 1
        %s240 = smul.addr %s239, 8
        %s241 = scalar_lea.vmem [#allocation9], %s240
        %v243 = vld [vmem:[%s209] sm:$0xf]
        %v244 = vld [vmem:[#allocation6] sm:$0xf]
        %v245 = vld [vmem:[#allocation6 + $0x4] sm:$0xf]
        %v246 = vld [vmem:[#allocation6 + $0x8] sm:$0xf]
        %v247 = vld [vmem:[#allocation6 + $0xc] sm:$0xf]
        %v252 = vunpack.c.l.b16 %v244
        %v253 = vunpack.c.l.b16 %v245
        %v254 = vunpack.c.l.b16 %v246
        %v255 = vunpack.c.l.b16 %v247
        %v256 = vpack.c.b16 %v253, %v252
        %v257 = vpack.c.b16 %v255, %v254
        %vm260 = vcmask 261120
        %v262 = vsel %vm260, %v243, 0
        %264 = vmatprep.subr.bf16.mxu0 0
        %265 = vmatpush1.bf16.msra.mxu0 0
        %266 = vmatprep.subr.bf16.mxu0 0
        %267 = vmatpush1.bf16.msra.mxu0 0
        %268 = vmatprep.subr.bf16.mxu0 0
        %269 = vmatpush1.bf16.msra.mxu0 0
        %270 = vmatprep.subr.bf16.mxu0 0
        %271 = vmatpush1.bf16.msra.mxu0 0
        %272 = vmatprep.subr.bf16.mxu0 0
        %273 = vmatpush1.bf16.msra.mxu0 0
        %274 = vmatprep.subr.bf16.mxu0 0
        %275 = vmatpush1.bf16.msra.mxu0 0
        %276 = vmatprep.subr.bf16.mxu0 0
        %277 = vmatpush1.bf16.msra.mxu0 %v257
        %278 = vmatprep.subr.bf16.mxu0 0
        %279 = vmatpush1.bf16.msra.mxu0 %v256
        %280 = vmatprep.subr.bf16.mxu0 0
        %281 = vmatpush2.bf16.msra.mxu0 0
        %282 = vmatprep.subr.bf16.mxu0 0
        %283 = vmatpush2.bf16.msra.mxu0 0
        %284 = vmatprep.subr.bf16.mxu0 0
        %285 = vmatpush2.bf16.msra.mxu0 0
        %286 = vmatprep.subr.bf16.mxu0 0
        %287 = vmatpush2.bf16.msra.mxu0 0
        %288 = vmatprep.subr.bf16.mxu0 0
        %289 = vmatpush2.bf16.msra.mxu0 0
        %290 = vmatprep.subr.bf16.mxu0 0
        %291 = vmatpush2.bf16.msra.mxu0 0
        %292 = vmatprep.subr.bf16.mxu0 0
        %293 = vmatpush2.bf16.msra.mxu0 0
        %294 = vmatprep.subr.bf16.mxu0 0
        %295 = vmatpush2.bf16.msra.mxu0 0
        %296 = vmatprep.mubr.bf16.mxu0 0
        %297 = vmatmul.mubr.bf16.gmra.mxu0 %v262
        %v298 = vpop.f32.mrf.mxu0
        %v299 = vadd.f32 0.0, %v298
        %v300 = vpop.f32.mrf.mxu0
        %v301 = vpop.f32.mrf.mxu0
        %v302 = vpop.f32.mrf.mxu0
        %303 = vdwg.mxu0
        %v304 = vmul.f32 %v299, 0.5
        %v305 = vpack.c.bf16 %v304, %v304
        %v306 = vpack.c.bf16 %v299, %v299
        %308 = vrot.lane.b32.xlu0 %v306, 96
        %v309 = vpop.permute.xlu0 %308
        %vm310 = vcmask 31744
        %v312 = vsel %vm310, %v305, 0
        %v315 = vsel %vm310, %v309, 0
        %317 = vmatprep.subr.bf16.mxu0 0
        %318 = vmatpush1.bf16.xpose.msra.mxu0 0
        %319 = vmatprep.subr.bf16.mxu0 0
        %320 = vmatpush1.bf16.xpose.msra.mxu0 0
        %321 = vmatprep.subr.bf16.mxu0 0
        %322 = vmatpush1.bf16.xpose.msra.mxu0 0
        %323 = vmatprep.subr.bf16.mxu0 0
        %324 = vmatpush1.bf16.xpose.msra.mxu0 0
        %325 = vmatprep.subr.bf16.mxu0 0
        %326 = vmatpush1.bf16.xpose.msra.mxu0 0
        %327 = vmatprep.subr.bf16.mxu0 0
        %328 = vmatpush1.bf16.xpose.msra.mxu0 0
        %329 = vmatprep.subr.bf16.mxu0 0
        %330 = vmatpush1.bf16.xpose.msra.mxu0 0
        %331 = vmatprep.subr.bf16.mxu0 0
        %332 = vmatpush1.bf16.xpose.msra.mxu0 %v315
        %333 = vmatprep.subr.bf16.mxu0 0
        %334 = vmatpush2.bf16.xpose.msra.mxu0 0
        %335 = vmatprep.subr.bf16.mxu0 0
        %336 = vmatpush2.bf16.xpose.msra.mxu0 0
        %337 = vmatprep.subr.bf16.mxu0 0
        %338 = vmatpush2.bf16.xpose.msra.mxu0 0
        %339 = vmatprep.subr.bf16.mxu0 0
        %340 = vmatpush2.bf16.xpose.msra.mxu0 0
        %341 = vmatprep.subr.bf16.mxu0 0
        %342 = vmatpush2.bf16.xpose.msra.mxu0 0
        %343 = vmatprep.subr.bf16.mxu0 0
        %344 = vmatpush2.bf16.xpose.msra.mxu0 0
        %345 = vmatprep.subr.bf16.mxu0 0
        %346 = vmatpush2.bf16.xpose.msra.mxu0 0
        %347 = vmatprep.subr.bf16.mxu0 0
        %348 = vmatpush2.bf16.xpose.msra.mxu0 0
        %349 = vmatprep.mubr.bf16.mxu0 0
        %350 = vmatmul.mubr.bf16.gmra.mxu0 %v312
        %v351 = vpop.f32.mrf.mxu0
        %v352 = vadd.f32 0.0, %v351
        %v353 = vpop.f32.mrf.mxu0
        %v354 = vpop.f32.mrf.mxu0
        %v355 = vpop.f32.mrf.mxu0
        %356 = vdwg.mxu0
        %vm357 = vcmask 64512
        %v358 = vsel %vm357, %v352, -inf
        %359 = vmax.xlane.f32.xlu0 %v358
        %v360 = vpop.xlane.xlu0 %359
        %v361 = vsub.f32 %v352, %v360
        %v362 = vmul.f32 %v361, 1.442695
        %v363 = vpow.pop %v362
        %v364 = vsel %vm357, %v363, 0.0
        %365 = vadd.xlane.f32.xlu0 %v364
        %v366 = vpop.xlane.xlu0 %365
        %v367 = vrcp.pop %v366
        %v368 = vmul.f32 %v363, %v367
        %v369 = vpack.c.bf16 %v368, %v368
        %370 = vrot.lane.b32.xlu0 %v306, 64
        %v371 = vpop.permute.xlu0 %370
        %v373 = vsel %vm357, %v369, 0
        %vm375 = vcmask 1043456
        %v377 = vsel %vm375, %v371, 0
        %379 = vmatprep.subr.bf16.mxu0 0
        %380 = vmatpush1.bf16.msra.mxu0 0
        %381 = vmatprep.subr.bf16.mxu0 0
        %382 = vmatpush1.bf16.msra.mxu0 0
        %383 = vmatprep.subr.bf16.mxu0 0
        %384 = vmatpush1.bf16.msra.mxu0 0
        %385 = vmatprep.subr.bf16.mxu0 0
        %386 = vmatpush1.bf16.msra.mxu0 0
        %387 = vmatprep.subr.bf16.mxu0 0
        %388 = vmatpush1.bf16.msra.mxu0 0
        %389 = vmatprep.subr.bf16.mxu0 0
        %390 = vmatpush1.bf16.msra.mxu0 0
        %391 = vmatprep.subr.bf16.mxu0 0
        %392 = vmatpush1.bf16.msra.mxu0 0
        %393 = vmatprep.subr.bf16.mxu0 0
        %394 = vmatpush1.bf16.msra.mxu0 %v377
        %395 = vmatprep.subr.bf16.mxu0 0
        %396 = vmatpush2.bf16.msra.mxu0 0
        %397 = vmatprep.subr.bf16.mxu0 0
        %398 = vmatpush2.bf16.msra.mxu0 0
        %399 = vmatprep.subr.bf16.mxu0 0
        %400 = vmatpush2.bf16.msra.mxu0 0
        %401 = vmatprep.subr.bf16.mxu0 0
        %402 = vmatpush2.bf16.msra.mxu0 0
        %403 = vmatprep.subr.bf16.mxu0 0
        %404 = vmatpush2.bf16.msra.mxu0 0
        %405 = vmatprep.subr.bf16.mxu0 0
        %406 = vmatpush2.bf16.msra.mxu0 0
        %407 = vmatprep.subr.bf16.mxu0 0
        %408 = vmatpush2.bf16.msra.mxu0 0
        %409 = vmatprep.subr.bf16.mxu0 0
        %410 = vmatpush2.bf16.msra.mxu0 0
        %411 = vmatprep.mubr.bf16.mxu0 0
        %412 = vmatmul.mubr.bf16.gmra.mxu0 %v373
        %v413 = vpop.f32.mrf.mxu0
        %v414 = vadd.f32 0.0, %v413
        %v415 = vpop.f32.mrf.mxu0
        %v416 = vpop.f32.mrf.mxu0
        %v417 = vpop.f32.mrf.mxu0
        %418 = vdwg.mxu0
        %v419 = vpack.c.bf16 %v414, %v414
        %vm420 = vcmask 27648
        %421 = vst.msk [vmem:[#allocation2] sm:$0xf] %vm420, %v419
        %423 = vrot.lane.b32.xlu0 %v305, 124
        %v424 = vpop.permute.xlu0 %423
        %425 = vrot.lane.b32.xlu0 %v306, 92
        %v426 = vpop.permute.xlu0 %425
        %v428 = vsel %vm310, %v424, 0
        %v431 = vsel %vm310, %v426, 0
        %433 = vmatprep.subr.bf16.mxu0 0
        %434 = vmatpush1.bf16.xpose.msra.mxu0 0
        %435 = vmatprep.subr.bf16.mxu0 0
        %436 = vmatpush1.bf16.xpose.msra.mxu0 0
        %437 = vmatprep.subr.bf16.mxu0 0
        %438 = vmatpush1.bf16.xpose.msra.mxu0 0
        %439 = vmatprep.subr.bf16.mxu0 0
        %440 = vmatpush1.bf16.xpose.msra.mxu0 0
        %441 = vmatprep.subr.bf16.mxu0 0
        %442 = vmatpush1.bf16.xpose.msra.mxu0 0
        %443 = vmatprep.subr.bf16.mxu0 0
        %444 = vmatpush1.bf16.xpose.msra.mxu0 0
        %445 = vmatprep.subr.bf16.mxu0 0
        %446 = vmatpush1.bf16.xpose.msra.mxu0 0
        %447 = vmatprep.subr.bf16.mxu0 0
        %448 = vmatpush1.bf16.xpose.msra.mxu0 %v431
        %449 = vmatprep.subr.bf16.mxu0 0
        %450 = vmatpush2.bf16.xpose.msra.mxu0 0
        %451 = vmatprep.subr.bf16.mxu0 0
        %452 = vmatpush2.bf16.xpose.msra.mxu0 0
        %453 = vmatprep.subr.bf16.mxu0 0
        %454 = vmatpush2.bf16.xpose.msra.mxu0 0
        %455 = vmatprep.subr.bf16.mxu0 0
        %456 = vmatpush2.bf16.xpose.msra.mxu0 0
        %457 = vmatprep.subr.bf16.mxu0 0
        %458 = vmatpush2.bf16.xpose.msra.mxu0 0
        %459 = vmatprep.subr.bf16.mxu0 0
        %460 = vmatpush2.bf16.xpose.msra.mxu0 0
        %461 = vmatprep.subr.bf16.mxu0 0
        %462 = vmatpush2.bf16.xpose.msra.mxu0 0
        %463 = vmatprep.subr.bf16.mxu0 0
        %464 = vmatpush2.bf16.xpose.msra.mxu0 0
        %465 = vmatprep.mubr.bf16.mxu0 0
        %466 = vmatmul.mubr.bf16.gmra.mxu0 %v428
        %v467 = vpop.f32.mrf.mxu0
        %v468 = vadd.f32 0.0, %v467
        %v469 = vpop.f32.mrf.mxu0
        %v470 = vpop.f32.mrf.mxu0
        %v471 = vpop.f32.mrf.mxu0
        %472 = vdwg.mxu0
        %v473 = vsel %vm357, %v468, -inf
        %474 = vmax.xlane.f32.xlu0 %v473
        %v475 = vpop.xlane.xlu0 %474
        %v476 = vsub.f32 %v468, %v475
        %v477 = vmul.f32 %v476, 1.442695
        %v478 = vpow.pop %v477
        %v479 = vsel %vm357, %v478, 0.0
        %480 = vadd.xlane.f32.xlu0 %v479
        %v481 = vpop.xlane.xlu0 %480
        %v482 = vrcp.pop %v481
        %v483 = vmul.f32 %v478, %v482
        %v484 = vpack.c.bf16 %v483, %v483
        %485 = vrot.lane.b32.xlu0 %v306, 60
        %v486 = vpop.permute.xlu0 %485
        %v488 = vsel %vm357, %v484, 0
        %v491 = vsel %vm375, %v486, 0
        %493 = vmatprep.subr.bf16.mxu0 0
        %494 = vmatpush1.bf16.msra.mxu0 0
        %495 = vmatprep.subr.bf16.mxu0 0
        %496 = vmatpush1.bf16.msra.mxu0 0
        %497 = vmatprep.subr.bf16.mxu0 0
        %498 = vmatpush1.bf16.msra.mxu0 0
        %499 = vmatprep.subr.bf16.mxu0 0
        %500 = vmatpush1.bf16.msra.mxu0 0
        %501 = vmatprep.subr.bf16.mxu0 0
        %502 = vmatpush1.bf16.msra.mxu0 0
        %503 = vmatprep.subr.bf16.mxu0 0
        %504 = vmatpush1.bf16.msra.mxu0 0
        %505 = vmatprep.subr.bf16.mxu0 0
        %506 = vmatpush1.bf16.msra.mxu0 0
        %507 = vmatprep.subr.bf16.mxu0 0
        %508 = vmatpush1.bf16.msra.mxu0 %v491
        %509 = vmatprep.subr.bf16.mxu0 0
        %510 = vmatpush2.bf16.msra.mxu0 0
        %511 = vmatprep.subr.bf16.mxu0 0
        %512 = vmatpush2.bf16.msra.mxu0 0
        %513 = vmatprep.subr.bf16.mxu0 0
        %514 = vmatpush2.bf16.msra.mxu0 0
        %515 = vmatprep.subr.bf16.mxu0 0
        %516 = vmatpush2.bf16.msra.mxu0 0
        %517 = vmatprep.subr.bf16.mxu0 0
        %518 = vmatpush2.bf16.msra.mxu0 0
        %519 = vmatprep.subr.bf16.mxu0 0
        %520 = vmatpush2.bf16.msra.mxu0 0
        %521 = vmatprep.subr.bf16.mxu0 0
        %522 = vmatpush2.bf16.msra.mxu0 0
        %523 = vmatprep.subr.bf16.mxu0 0
        %524 = vmatpush2.bf16.msra.mxu0 0
        %525 = vmatprep.mubr.bf16.mxu0 0
        %526 = vmatmul.mubr.bf16.gmra.mxu0 %v488
        %v527 = vpop.f32.mrf.mxu0
        %v528 = vadd.f32 0.0, %v527
        %v529 = vpop.f32.mrf.mxu0
        %v530 = vpop.f32.mrf.mxu0
        %v531 = vpop.f32.mrf.mxu0
        %532 = vdwg.mxu0
        %v533 = vpack.c.bf16 %v528, %v528
        %v535 = vunpack.c.l.b16 %v533
        %v536 = vpack.c.b16 %v535, %v535
        %537 = vrot.lane.b32.xlu0 %v536, 4
        %v538 = vpop.permute.xlu0 %537
        %vm540 = vcmask 60448
        %541 = vst.msk [vmem:[#allocation2] sm:$0xf] %vm540, %v538
        %542 = vrot.lane.b32.xlu0 %v305, 120
        %v543 = vpop.permute.xlu0 %542
        %544 = vrot.lane.b32.xlu0 %v306, 88
        %v545 = vpop.permute.xlu0 %544
        %v547 = vsel %vm310, %v543, 0
        %v550 = vsel %vm310, %v545, 0
        %552 = vmatprep.subr.bf16.mxu0 0
        %553 = vmatpush1.bf16.xpose.msra.mxu0 0
        %554 = vmatprep.subr.bf16.mxu0 0
        %555 = vmatpush1.bf16.xpose.msra.mxu0 0
        %556 = vmatprep.subr.bf16.mxu0 0
        %557 = vmatpush1.bf16.xpose.msra.mxu0 0
        %558 = vmatprep.subr.bf16.mxu0 0
        %559 = vmatpush1.bf16.xpose.msra.mxu0 0
        %560 = vmatprep.subr.bf16.mxu0 0
        %561 = vmatpush1.bf16.xpose.msra.mxu0 0
        %562 = vmatprep.subr.bf16.mxu0 0
        %563 = vmatpush1.bf16.xpose.msra.mxu0 0
        %564 = vmatprep.subr.bf16.mxu0 0
        %565 = vmatpush1.bf16.xpose.msra.mxu0 0
        %566 = vmatprep.subr.bf16.mxu0 0
        %567 = vmatpush1.bf16.xpose.msra.mxu0 %v550
        %568 = vmatprep.subr.bf16.mxu0 0
        %569 = vmatpush2.bf16.xpose.msra.mxu0 0
        %570 = vmatprep.subr.bf16.mxu0 0
        %571 = vmatpush2.bf16.xpose.msra.mxu0 0
        %572 = vmatprep.subr.bf16.mxu0 0
        %573 = vmatpush2.bf16.xpose.msra.mxu0 0
        %574 = vmatprep.subr.bf16.mxu0 0
        %575 = vmatpush2.bf16.xpose.msra.mxu0 0
        %576 = vmatprep.subr.bf16.mxu0 0
        %577 = vmatpush2.bf16.xpose.msra.mxu0 0
        %578 = vmatprep.subr.bf16.mxu0 0
        %579 = vmatpush2.bf16.xpose.msra.mxu0 0
        %580 = vmatprep.subr.bf16.mxu0 0
        %581 = vmatpush2.bf16.xpose.msra.mxu0 0
        %582 = vmatprep.subr.bf16.mxu0 0
        %583 = vmatpush2.bf16.xpose.msra.mxu0 0
        %584 = vmatprep.mubr.bf16.mxu0 0
        %585 = vmatmul.mubr.bf16.gmra.mxu0 %v547
        %v586 = vpop.f32.mrf.mxu0
        %v587 = vadd.f32 0.0, %v586
        %v588 = vpop.f32.mrf.mxu0
        %v589 = vpop.f32.mrf.mxu0
        %v590 = vpop.f32.mrf.mxu0
        %591 = vdwg.mxu0
        %v592 = vsel %vm357, %v587, -inf
        %593 = vmax.xlane.f32.xlu0 %v592
        %v594 = vpop.xlane.xlu0 %593
        %v595 = vsub.f32 %v587, %v594
        %v596 = vmul.f32 %v595, 1.442695
        %v597 = vpow.pop %v596
        %v598 = vsel %vm357, %v597, 0.0
        %599 = vadd.xlane.f32.xlu0 %v598
        %v600 = vpop.xlane.xlu0 %599
        %v601 = vrcp.pop %v600
        %v602 = vmul.f32 %v597, %v601
        %v603 = vpack.c.bf16 %v602, %v602
        %604 = vrot.lane.b32.xlu0 %v306, 56
        %v605 = vpop.permute.xlu0 %604
        %v607 = vsel %vm357, %v603, 0
        %v610 = vsel %vm375, %v605, 0
        %612 = vmatprep.subr.bf16.mxu0 0
        %613 = vmatpush1.bf16.msra.mxu0 0
        %614 = vmatprep.subr.bf16.mxu0 0
        %615 = vmatpush1.bf16.msra.mxu0 0
        %616 = vmatprep.subr.bf16.mxu0 0
        %617 = vmatpush1.bf16.msra.mxu0 0
        %618 = vmatprep.subr.bf16.mxu0 0
        %619 = vmatpush1.bf16.msra.mxu0 0
        %620 = vmatprep.subr.bf16.mxu0 0
        %621 = vmatpush1.bf16.msra.mxu0 0
        %622 = vmatprep.subr.bf16.mxu0 0
        %623 = vmatpush1.bf16.msra.mxu0 0
        %624 = vmatprep.subr.bf16.mxu0 0
        %625 = vmatpush1.bf16.msra.mxu0 0
        %626 = vmatprep.subr.bf16.mxu0 0
        %627 = vmatpush1.bf16.msra.mxu0 %v610
        %628 = vmatprep.subr.bf16.mxu0 0
        %629 = vmatpush2.bf16.msra.mxu0 0
        %630 = vmatprep.subr.bf16.mxu0 0
        %631 = vmatpush2.bf16.msra.mxu0 0
        %632 = vmatprep.subr.bf16.mxu0 0
        %633 = vmatpush2.bf16.msra.mxu0 0
        %634 = vmatprep.subr.bf16.mxu0 0
        %635 = vmatpush2.bf16.msra.mxu0 0
        %636 = vmatprep.subr.bf16.mxu0 0
        %637 = vmatpush2.bf16.msra.mxu0 0
        %638 = vmatprep.subr.bf16.mxu0 0
        %639 = vmatpush2.bf16.msra.mxu0 0
        %640 = vmatprep.subr.bf16.mxu0 0
        %641 = vmatpush2.bf16.msra.mxu0 0
        %642 = vmatprep.subr.bf16.mxu0 0
        %643 = vmatpush2.bf16.msra.mxu0 0
        %644 = vmatprep.mubr.bf16.mxu0 0
        %645 = vmatmul.mubr.bf16.gmra.mxu0 %v607
        %v646 = vpop.f32.mrf.mxu0
        %v647 = vadd.f32 0.0, %v646
        %v648 = vpop.f32.mrf.mxu0
        %v649 = vpop.f32.mrf.mxu0
        %v650 = vpop.f32.mrf.mxu0
        %651 = vdwg.mxu0
        %v652 = vpack.c.bf16 %v647, %v647
        %v654 = vunpack.c.l.b16 %v652
        %v655 = vpack.c.b16 %v654, %v654
        %656 = vrot.lane.b32.xlu0 %v655, 8
        %v657 = vpop.permute.xlu0 %656
        %vm659 = vcmask 93248
        %660 = vst.msk [vmem:[#allocation2] sm:$0xf] %vm659, %v657
        %661 = vrot.lane.b32.xlu0 %v305, 116
        %v662 = vpop.permute.xlu0 %661
        %663 = vrot.lane.b32.xlu0 %v306, 84
        %v664 = vpop.permute.xlu0 %663
        %v666 = vsel %vm310, %v662, 0
        %v669 = vsel %vm310, %v664, 0
        %671 = vmatprep.subr.bf16.mxu0 0
        %672 = vmatpush1.bf16.xpose.msra.mxu0 0
        %673 = vmatprep.subr.bf16.mxu0 0
        %674 = vmatpush1.bf16.xpose.msra.mxu0 0
        %675 = vmatprep.subr.bf16.mxu0 0
        %676 = vmatpush1.bf16.xpose.msra.mxu0 0
        %677 = vmatprep.subr.bf16.mxu0 0
        %678 = vmatpush1.bf16.xpose.msra.mxu0 0
        %679 = vmatprep.subr.bf16.mxu0 0
        %680 = vmatpush1.bf16.xpose.msra.mxu0 0
        %681 = vmatprep.subr.bf16.mxu0 0
        %682 = vmatpush1.bf16.xpose.msra.mxu0 0
        %683 = vmatprep.subr.bf16.mxu0 0
        %684 = vmatpush1.bf16.xpose.msra.mxu0 0
        %685 = vmatprep.subr.bf16.mxu0 0
        %686 = vmatpush1.bf16.xpose.msra.mxu0 %v669
        %687 = vmatprep.subr.bf16.mxu0 0
        %688 = vmatpush2.bf16.xpose.msra.mxu0 0
        %689 = vmatprep.subr.bf16.mxu0 0
        %690 = vmatpush2.bf16.xpose.msra.mxu0 0
        %691 = vmatprep.subr.bf16.mxu0 0
        %692 = vmatpush2.bf16.xpose.msra.mxu0 0
        %693 = vmatprep.subr.bf16.mxu0 0
        %694 = vmatpush2.bf16.xpose.msra.mxu0 0
        %695 = vmatprep.subr.bf16.mxu0 0
        %696 = vmatpush2.bf16.xpose.msra.mxu0 0
        %697 = vmatprep.subr.bf16.mxu0 0
        %698 = vmatpush2.bf16.xpose.msra.mxu0 0
        %699 = vmatprep.subr.bf16.mxu0 0
        %700 = vmatpush2.bf16.xpose.msra.mxu0 0
        %701 = vmatprep.subr.bf16.mxu0 0
        %702 = vmatpush2.bf16.xpose.msra.mxu0 0
        %703 = vmatprep.mubr.bf16.mxu0 0
        %704 = vmatmul.mubr.bf16.gmra.mxu0 %v666
        %v705 = vpop.f32.mrf.mxu0
        %v706 = vadd.f32 0.0, %v705
        %v707 = vpop.f32.mrf.mxu0
        %v708 = vpop.f32.mrf.mxu0
        %v709 = vpop.f32.mrf.mxu0
        %710 = vdwg.mxu0
        %v711 = vsel %vm357, %v706, -inf
        %712 = vmax.xlane.f32.xlu0 %v711
        %v713 = vpop.xlane.xlu0 %712
        %v714 = vsub.f32 %v706, %v713
        %v715 = vmul.f32 %v714, 1.442695
        %v716 = vpow.pop %v715
        %v717 = vsel %vm357, %v716, 0.0
        %718 = vadd.xlane.f32.xlu0 %v717
        %v719 = vpop.xlane.xlu0 %718
        %v720 = vrcp.pop %v719
        %v721 = vmul.f32 %v716, %v720
        %v722 = vpack.c.bf16 %v721, %v721
        %723 = vrot.lane.b32.xlu0 %v306, 52
        %v724 = vpop.permute.xlu0 %723
        %v726 = vsel %vm357, %v722, 0
        %v729 = vsel %vm375, %v724, 0
        %731 = vmatprep.subr.bf16.mxu0 0
        %732 = vmatpush1.bf16.msra.mxu0 0
        %733 = vmatprep.subr.bf16.mxu0 0
        %734 = vmatpush1.bf16.msra.mxu0 0
        %735 = vmatprep.subr.bf16.mxu0 0
        %736 = vmatpush1.bf16.msra.mxu0 0
        %737 = vmatprep.subr.bf16.mxu0 0
        %738 = vmatpush1.bf16.msra.mxu0 0
        %739 = vmatprep.subr.bf16.mxu0 0
        %740 = vmatpush1.bf16.msra.mxu0 0
        %741 = vmatprep.subr.bf16.mxu0 0
        %742 = vmatpush1.bf16.msra.mxu0 0
        %743 = vmatprep.subr.bf16.mxu0 0
        %744 = vmatpush1.bf16.msra.mxu0 0
        %745 = vmatprep.subr.bf16.mxu0 0
        %746 = vmatpush1.bf16.msra.mxu0 %v729
        %747 = vmatprep.subr.bf16.mxu0 0
        %748 = vmatpush2.bf16.msra.mxu0 0
        %749 = vmatprep.subr.bf16.mxu0 0
        %750 = vmatpush2.bf16.msra.mxu0 0
        %751 = vmatprep.subr.bf16.mxu0 0
        %752 = vmatpush2.bf16.msra.mxu0 0
        %753 = vmatprep.subr.bf16.mxu0 0
        %754 = vmatpush2.bf16.msra.mxu0 0
        %755 = vmatprep.subr.bf16.mxu0 0
        %756 = vmatpush2.bf16.msra.mxu0 0
        %757 = vmatprep.subr.bf16.mxu0 0
        %758 = vmatpush2.bf16.msra.mxu0 0
        %759 = vmatprep.subr.bf16.mxu0 0
        %760 = vmatpush2.bf16.msra.mxu0 0
        %761 = vmatprep.subr.bf16.mxu0 0
        %762 = vmatpush2.bf16.msra.mxu0 0
        %763 = vmatprep.mubr.bf16.mxu0 0
        %764 = vmatmul.mubr.bf16.gmra.mxu0 %v726
        %v765 = vpop.f32.mrf.mxu0
        %v766 = vadd.f32 0.0, %v765
        %v767 = vpop.f32.mrf.mxu0
        %v768 = vpop.f32.mrf.mxu0
        %v769 = vpop.f32.mrf.mxu0
        %770 = vdwg.mxu0
        %v771 = vpack.c.bf16 %v766, %v766
        %v773 = vunpack.c.l.b16 %v771
        %v774 = vpack.c.b16 %v773, %v773
        %775 = vrot.lane.b32.xlu0 %v774, 12
        %v776 = vpop.permute.xlu0 %775
        %vm778 = vcmask 126048
        %779 = vst.msk [vmem:[#allocation2] sm:$0xf] %vm778, %v776
        %780 = vrot.lane.b32.xlu0 %v305, 112
        %v781 = vpop.permute.xlu0 %780
        %782 = vrot.lane.b32.xlu0 %v306, 80
        %v783 = vpop.permute.xlu0 %782
        %v785 = vsel %vm310, %v781, 0
        %v788 = vsel %vm310, %v783, 0
        %790 = vmatprep.subr.bf16.mxu0 0
        %791 = vmatpush1.bf16.xpose.msra.mxu0 0
        %792 = vmatprep.subr.bf16.mxu0 0
        %793 = vmatpush1.bf16.xpose.msra.mxu0 0
        %794 = vmatprep.subr.bf16.mxu0 0
        %795 = vmatpush1.bf16.xpose.msra.mxu0 0
        %796 = vmatprep.subr.bf16.mxu0 0
        %797 = vmatpush1.bf16.xpose.msra.mxu0 0
        %798 = vmatprep.subr.bf16.mxu0 0
        %799 = vmatpush1.bf16.xpose.msra.mxu0 0
        %800 = vmatprep.subr.bf16.mxu0 0
        %801 = vmatpush1.bf16.xpose.msra.mxu0 0
        %802 = vmatprep.subr.bf16.mxu0 0
        %803 = vmatpush1.bf16.xpose.msra.mxu0 0
        %804 = vmatprep.subr.bf16.mxu0 0
        %805 = vmatpush1.bf16.xpose.msra.mxu0 %v788
        %806 = vmatprep.subr.bf16.mxu0 0
        %807 = vmatpush2.bf16.xpose.msra.mxu0 0
        %808 = vmatprep.subr.bf16.mxu0 0
        %809 = vmatpush2.bf16.xpose.msra.mxu0 0
        %810 = vmatprep.subr.bf16.mxu0 0
        %811 = vmatpush2.bf16.xpose.msra.mxu0 0
        %812 = vmatprep.subr.bf16.mxu0 0
        %813 = vmatpush2.bf16.xpose.msra.mxu0 0
        %814 = vmatprep.subr.bf16.mxu0 0
        %815 = vmatpush2.bf16.xpose.msra.mxu0 0
        %816 = vmatprep.subr.bf16.mxu0 0
        %817 = vmatpush2.bf16.xpose.msra.mxu0 0
        %818 = vmatprep.subr.bf16.mxu0 0
        %819 = vmatpush2.bf16.xpose.msra.mxu0 0
        %820 = vmatprep.subr.bf16.mxu0 0
        %821 = vmatpush2.bf16.xpose.msra.mxu0 0
        %822 = vmatprep.mubr.bf16.mxu0 0
        %823 = vmatmul.mubr.bf16.gmra.mxu0 %v785
        %v824 = vpop.f32.mrf.mxu0
        %v825 = vadd.f32 0.0, %v824
        %v826 = vpop.f32.mrf.mxu0
        %v827 = vpop.f32.mrf.mxu0
        %v828 = vpop.f32.mrf.mxu0
        %829 = vdwg.mxu0
        %v830 = vsel %vm357, %v825, -inf
        %831 = vmax.xlane.f32.xlu0 %v830
        %v832 = vpop.xlane.xlu0 %831
        %v833 = vsub.f32 %v825, %v832
        %v834 = vmul.f32 %v833, 1.442695
        %v835 = vpow.pop %v834
        %v836 = vsel %vm357, %v835, 0.0
        %837 = vadd.xlane.f32.xlu0 %v836
        %v838 = vpop.xlane.xlu0 %837
        %v839 = vrcp.pop %v838
        %v840 = vmul.f32 %v835, %v839
        %v841 = vpack.c.bf16 %v840, %v840
        %842 = vrot.lane.b32.xlu0 %v306, 48
        %v843 = vpop.permute.xlu0 %842
        %v845 = vsel %vm357, %v841, 0
        %v848 = vsel %vm375, %v843, 0
        %850 = vmatprep.subr.bf16.mxu0 0
        %851 = vmatpush1.bf16.msra.mxu0 0
        %852 = vmatprep.subr.bf16.mxu0 0
        %853 = vmatpush1.bf16.msra.mxu0 0
        %854 = vmatprep.subr.bf16.mxu0 0
        %855 = vmatpush1.bf16.msra.mxu0 0
        %856 = vmatprep.subr.bf16.mxu0 0
        %857 = vmatpush1.bf16.msra.mxu0 0
        %858 = vmatprep.subr.bf16.mxu0 0
        %859 = vmatpush1.bf16.msra.mxu0 0
        %860 = vmatprep.subr.bf16.mxu0 0
        %861 = vmatpush1.bf16.msra.mxu0 0
        %862 = vmatprep.subr.bf16.mxu0 0
        %863 = vmatpush1.bf16.msra.mxu0 0
        %864 = vmatprep.subr.bf16.mxu0 0
        %865 = vmatpush1.bf16.msra.mxu0 %v848
        %866 = vmatprep.subr.bf16.mxu0 0
        %867 = vmatpush2.bf16.msra.mxu0 0
        %868 = vmatprep.subr.bf16.mxu0 0
        %869 = vmatpush2.bf16.msra.mxu0 0
        %870 = vmatprep.subr.bf16.mxu0 0
        %871 = vmatpush2.bf16.msra.mxu0 0
        %872 = vmatprep.subr.bf16.mxu0 0
        %873 = vmatpush2.bf16.msra.mxu0 0
        %874 = vmatprep.subr.bf16.mxu0 0
        %875 = vmatpush2.bf16.msra.mxu0 0
        %876 = vmatprep.subr.bf16.mxu0 0
        %877 = vmatpush2.bf16.msra.mxu0 0
        %878 = vmatprep.subr.bf16.mxu0 0
        %879 = vmatpush2.bf16.msra.mxu0 0
        %880 = vmatprep.subr.bf16.mxu0 0
        %881 = vmatpush2.bf16.msra.mxu0 0
        %882 = vmatprep.mubr.bf16.mxu0 0
        %883 = vmatmul.mubr.bf16.gmra.mxu0 %v845
        %v884 = vpop.f32.mrf.mxu0
        %v885 = vadd.f32 0.0, %v884
        %v886 = vpop.f32.mrf.mxu0
        %v887 = vpop.f32.mrf.mxu0
        %v888 = vpop.f32.mrf.mxu0
        %889 = vdwg.mxu0
        %v890 = vpack.c.bf16 %v885, %v885
        %v892 = vunpack.c.l.b16 %v890
        %v893 = vpack.c.b16 %v892, %v892
        %894 = vrot.lane.b32.xlu0 %v893, 16
        %v895 = vpop.permute.xlu0 %894
        %vm897 = vcmask 158848
        %898 = vst.msk [vmem:[#allocation2] sm:$0xf] %vm897, %v895
        %899 = vrot.lane.b32.xlu0 %v305, 108
        %v900 = vpop.permute.xlu0 %899
        %901 = vrot.lane.b32.xlu0 %v306, 76
        %v902 = vpop.permute.xlu0 %901
        %v904 = vsel %vm310, %v900, 0
        %v907 = vsel %vm310, %v902, 0
        %909 = vmatprep.subr.bf16.mxu0 0
        %910 = vmatpush1.bf16.xpose.msra.mxu0 0
        %911 = vmatprep.subr.bf16.mxu0 0
        %912 = vmatpush1.bf16.xpose.msra.mxu0 0
        %913 = vmatprep.subr.bf16.mxu0 0
        %914 = vmatpush1.bf16.xpose.msra.mxu0 0
        %915 = vmatprep.subr.bf16.mxu0 0
        %916 = vmatpush1.bf16.xpose.msra.mxu0 0
        %917 = vmatprep.subr.bf16.mxu0 0
        %918 = vmatpush1.bf16.xpose.msra.mxu0 0
        %919 = vmatprep.subr.bf16.mxu0 0
        %920 = vmatpush1.bf16.xpose.msra.mxu0 0
        %921 = vmatprep.subr.bf16.mxu0 0
        %922 = vmatpush1.bf16.xpose.msra.mxu0 0
        %923 = vmatprep.subr.bf16.mxu0 0
        %924 = vmatpush1.bf16.xpose.msra.mxu0 %v907
        %925 = vmatprep.subr.bf16.mxu0 0
        %926 = vmatpush2.bf16.xpose.msra.mxu0 0
        %927 = vmatprep.subr.bf16.mxu0 0
        %928 = vmatpush2.bf16.xpose.msra.mxu0 0
        %929 = vmatprep.subr.bf16.mxu0 0
        %930 = vmatpush2.bf16.xpose.msra.mxu0 0
        %931 = vmatprep.subr.bf16.mxu0 0
        %932 = vmatpush2.bf16.xpose.msra.mxu0 0
        %933 = vmatprep.subr.bf16.mxu0 0
        %934 = vmatpush2.bf16.xpose.msra.mxu0 0
        %935 = vmatprep.subr.bf16.mxu0 0
        %936 = vmatpush2.bf16.xpose.msra.mxu0 0
        %937 = vmatprep.subr.bf16.mxu0 0
        %938 = vmatpush2.bf16.xpose.msra.mxu0 0
        %939 = vmatprep.subr.bf16.mxu0 0
        %940 = vmatpush2.bf16.xpose.msra.mxu0 0
        %941 = vmatprep.mubr.bf16.mxu0 0
        %942 = vmatmul.mubr.bf16.gmra.mxu0 %v904
        %v943 = vpop.f32.mrf.mxu0
        %v944 = vadd.f32 0.0, %v943
        %v945 = vpop.f32.mrf.mxu0
        %v946 = vpop.f32.mrf.mxu0
        %v947 = vpop.f32.mrf.mxu0
        %948 = vdwg.mxu0
        %v949 = vsel %vm357, %v944, -inf
        %950 = vmax.xlane.f32.xlu0 %v949
        %v951 = vpop.xlane.xlu0 %950
        %v952 = vsub.f32 %v944, %v951
        %v953 = vmul.f32 %v952, 1.442695
        %v954 = vpow.pop %v953
        %v955 = vsel %vm357, %v954, 0.0
        %956 = vadd.xlane.f32.xlu0 %v955
        %v957 = vpop.xlane.xlu0 %956
        %v958 = vrcp.pop %v957
        %v959 = vmul.f32 %v954, %v958
        %v960 = vpack.c.bf16 %v959, %v959
        %961 = vrot.lane.b32.xlu0 %v306, 44
        %v962 = vpop.permute.xlu0 %961
        %v964 = vsel %vm357, %v960, 0
        %v967 = vsel %vm375, %v962, 0
        %969 = vmatprep.subr.bf16.mxu0 0
        %970 = vmatpush1.bf16.msra.mxu0 0
        %971 = vmatprep.subr.bf16.mxu0 0
        %972 = vmatpush1.bf16.msra.mxu0 0
        %973 = vmatprep.subr.bf16.mxu0 0
        %974 = vmatpush1.bf16.msra.mxu0 0
        %975 = vmatprep.subr.bf16.mxu0 0
        %976 = vmatpush1.bf16.msra.mxu0 0
        %977 = vmatprep.subr.bf16.mxu0 0
        %978 = vmatpush1.bf16.msra.mxu0 0
        %979 = vmatprep.subr.bf16.mxu0 0
        %980 = vmatpush1.bf16.msra.mxu0 0
        %981 = vmatprep.subr.bf16.mxu0 0
        %982 = vmatpush1.bf16.msra.mxu0 0
        %983 = vmatprep.subr.bf16.mxu0 0
        %984 = vmatpush1.bf16.msra.mxu0 %v967
        %985 = vmatprep.subr.bf16.mxu0 0
        %986 = vmatpush2.bf16.msra.mxu0 0
        %987 = vmatprep.subr.bf16.mxu0 0
        %988 = vmatpush2.bf16.msra.mxu0 0
        %989 = vmatprep.subr.bf16.mxu0 0
        %990 = vmatpush2.bf16.msra.mxu0 0
        %991 = vmatprep.subr.bf16.mxu0 0
        %992 = vmatpush2.bf16.msra.mxu0 0
        %993 = vmatprep.subr.bf16.mxu0 0
        %994 = vmatpush2.bf16.msra.mxu0 0
        %995 = vmatprep.subr.bf16.mxu0 0
        %996 = vmatpush2.bf16.msra.mxu0 0
        %997 = vmatprep.subr.bf16.mxu0 0
        %998 = vmatpush2.bf16.msra.mxu0 0
        %999 = vmatprep.subr.bf16.mxu0 0
        %1000 = vmatpush2.bf16.msra.mxu0 0
        %1001 = vmatprep.mubr.bf16.mxu0 0
        %1002 = vmatmul.mubr.bf16.gmra.mxu0 %v964
        %v1003 = vpop.f32.mrf.mxu0
        %v1004 = vadd.f32 0.0, %v1003
        %v1005 = vpop.f32.mrf.mxu0
        %v1006 = vpop.f32.mrf.mxu0
        %v1007 = vpop.f32.mrf.mxu0
        %1008 = vdwg.mxu0
        %v1009 = vpack.c.bf16 %v1004, %v1004
        %v1011 = vunpack.c.l.b16 %v1009
        %v1012 = vpack.c.b16 %v1011, %v1011
        %1013 = vrot.lane.b32.xlu0 %v1012, 20
        %v1014 = vpop.permute.xlu0 %1013
        %vm1016 = vcmask 191648
        %1017 = vst.msk [vmem:[#allocation2] sm:$0xf] %vm1016, %v1014
        %1018 = vrot.lane.b32.xlu0 %v305, 104
        %v1019 = vpop.permute.xlu0 %1018
        %1020 = vrot.lane.b32.xlu0 %v306, 72
        %v1021 = vpop.permute.xlu0 %1020
        %v1023 = vsel %vm310, %v1019, 0
        %v1026 = vsel %vm310, %v1021, 0
        %1028 = vmatprep.subr.bf16.mxu0 0
        %1029 = vmatpush1.bf16.xpose.msra.mxu0 0
        %1030 = vmatprep.subr.bf16.mxu0 0
        %1031 = vmatpush1.bf16.xpose.msra.mxu0 0
        %1032 = vmatprep.subr.bf16.mxu0 0
        %1033 = vmatpush1.bf16.xpose.msra.mxu0 0
        %1034 = vmatprep.subr.bf16.mxu0 0
        %1035 = vmatpush1.bf16.xpose.msra.mxu0 0
        %1036 = vmatprep.subr.bf16.mxu0 0
        %1037 = vmatpush1.bf16.xpose.msra.mxu0 0
        %1038 = vmatprep.subr.bf16.mxu0 0
        %1039 = vmatpush1.bf16.xpose.msra.mxu0 0
        %1040 = vmatprep.subr.bf16.mxu0 0
        %1041 = vmatpush1.bf16.xpose.msra.mxu0 0
        %1042 = vmatprep.subr.bf16.mxu0 0
        %1043 = vmatpush1.bf16.xpose.msra.mxu0 %v1026
        %1044 = vmatprep.subr.bf16.mxu0 0
        %1045 = vmatpush2.bf16.xpose.msra.mxu0 0
        %1046 = vmatprep.subr.bf16.mxu0 0
        %1047 = vmatpush2.bf16.xpose.msra.mxu0 0
        %1048 = vmatprep.subr.bf16.mxu0 0
        %1049 = vmatpush2.bf16.xpose.msra.mxu0 0
        %1050 = vmatprep.subr.bf16.mxu0 0
        %1051 = vmatpush2.bf16.xpose.msra.mxu0 0
        %1052 = vmatprep.subr.bf16.mxu0 0
        %1053 = vmatpush2.bf16.xpose.msra.mxu0 0
        %1054 = vmatprep.subr.bf16.mxu0 0
        %1055 = vmatpush2.bf16.xpose.msra.mxu0 0
        %1056 = vmatprep.subr.bf16.mxu0 0
        %1057 = vmatpush2.bf16.xpose.msra.mxu0 0
        %1058 = vmatprep.subr.bf16.mxu0 0
        %1059 = vmatpush2.bf16.xpose.msra.mxu0 0
        %1060 = vmatprep.mubr.bf16.mxu0 0
        %1061 = vmatmul.mubr.bf16.gmra.mxu0 %v1023
        %v1062 = vpop.f32.mrf.mxu0
        %v1063 = vadd.f32 0.0, %v1062
        %v1064 = vpop.f32.mrf.mxu0
        %v1065 = vpop.f32.mrf.mxu0
        %v1066 = vpop.f32.mrf.mxu0
        %1067 = vdwg.mxu0
        %v1068 = vsel %vm357, %v1063, -inf
        %1069 = vmax.xlane.f32.xlu0 %v1068
        %v1070 = vpop.xlane.xlu0 %1069
        %v1071 = vsub.f32 %v1063, %v1070
        %v1072 = vmul.f32 %v1071, 1.442695
        %v1073 = vpow.pop %v1072
        %v1074 = vsel %vm357, %v1073, 0.0
        %1075 = vadd.xlane.f32.xlu0 %v1074
        %v1076 = vpop.xlane.xlu0 %1075
        %v1077 = vrcp.pop %v1076
        %v1078 = vmul.f32 %v1073, %v1077
        %v1079 = vpack.c.bf16 %v1078, %v1078
        %1080 = vrot.lane.b32.xlu0 %v306, 40
        %v1081 = vpop.permute.xlu0 %1080
        %v1083 = vsel %vm357, %v1079, 0
        %v1086 = vsel %vm375, %v1081, 0
        %1088 = vmatprep.subr.bf16.mxu0 0
        %1089 = vmatpush1.bf16.msra.mxu0 0
        %1090 = vmatprep.subr.bf16.mxu0 0
        %1091 = vmatpush1.bf16.msra.mxu0 0
        %1092 = vmatprep.subr.bf16.mxu0 0
        %1093 = vmatpush1.bf16.msra.mxu0 0
        %1094 = vmatprep.subr.bf16.mxu0 0
        %1095 = vmatpush1.bf16.msra.mxu0 0
        %1096 = vmatprep.subr.bf16.mxu0 0
        %1097 = vmatpush1.bf16.msra.mxu0 0
        %1098 = vmatprep.subr.bf16.mxu0 0
        %1099 = vmatpush1.bf16.msra.mxu0 0
        %1100 = vmatprep.subr.bf16.mxu0 0
        %1101 = vmatpush1.bf16.msra.mxu0 0
        %1102 = vmatprep.subr.bf16.mxu0 0
        %1103 = vmatpush1.bf16.msra.mxu0 %v1086
        %1104 = vmatprep.subr.bf16.mxu0 0
        %1105 = vmatpush2.bf16.msra.mxu0 0
        %1106 = vmatprep.subr.bf16.mxu0 0
        %1107 = vmatpush2.bf16.msra.mxu0 0
        %1108 = vmatprep.subr.bf16.mxu0 0
        %1109 = vmatpush2.bf16.msra.mxu0 0
        %1110 = vmatprep.subr.bf16.mxu0 0
        %1111 = vmatpush2.bf16.msra.mxu0 0
        %1112 = vmatprep.subr.bf16.mxu0 0
        %1113 = vmatpush2.bf16.msra.mxu0 0
        %1114 = vmatprep.subr.bf16.mxu0 0
        %1115 = vmatpush2.bf16.msra.mxu0 0
        %1116 = vmatprep.subr.bf16.mxu0 0
        %1117 = vmatpush2.bf16.msra.mxu0 0
        %1118 = vmatprep.subr.bf16.mxu0 0
        %1119 = vmatpush2.bf16.msra.mxu0 0
        %1120 = vmatprep.mubr.bf16.mxu0 0
        %1121 = vmatmul.mubr.bf16.gmra.mxu0 %v1083
        %v1122 = vpop.f32.mrf.mxu0
        %v1123 = vadd.f32 0.0, %v1122
        %v1124 = vpop.f32.mrf.mxu0
        %v1125 = vpop.f32.mrf.mxu0
        %v1126 = vpop.f32.mrf.mxu0
        %1127 = vdwg.mxu0
        %v1128 = vpack.c.bf16 %v1123, %v1123
        %v1130 = vunpack.c.l.b16 %v1128
        %v1131 = vpack.c.b16 %v1130, %v1130
        %1132 = vrot.lane.b32.xlu0 %v1131, 24
        %v1133 = vpop.permute.xlu0 %1132
        %vm1135 = vcmask 224448
        %1136 = vst.msk [vmem:[#allocation2] sm:$0xf] %vm1135, %v1133
        %1137 = vrot.lane.b32.xlu0 %v305, 100
        %v1138 = vpop.permute.xlu0 %1137
        %1139 = vrot.lane.b32.xlu0 %v306, 68
        %v1140 = vpop.permute.xlu0 %1139
        %v1142 = vsel %vm310, %v1138, 0
        %v1145 = vsel %vm310, %v1140, 0
        %1147 = vmatprep.subr.bf16.mxu0 0
        %1148 = vmatpush1.bf16.xpose.msra.mxu0 0
        %1149 = vmatprep.subr.bf16.mxu0 0
        %1150 = vmatpush1.bf16.xpose.msra.mxu0 0
        %1151 = vmatprep.subr.bf16.mxu0 0
        %1152 = vmatpush1.bf16.xpose.msra.mxu0 0
        %1153 = vmatprep.subr.bf16.mxu0 0
        %1154 = vmatpush1.bf16.xpose.msra.mxu0 0
        %1155 = vmatprep.subr.bf16.mxu0 0
        %1156 = vmatpush1.bf16.xpose.msra.mxu0 0
        %1157 = vmatprep.subr.bf16.mxu0 0
        %1158 = vmatpush1.bf16.xpose.msra.mxu0 0
        %1159 = vmatprep.subr.bf16.mxu0 0
        %1160 = vmatpush1.bf16.xpose.msra.mxu0 0
        %1161 = vmatprep.subr.bf16.mxu0 0
        %1162 = vmatpush1.bf16.xpose.msra.mxu0 %v1145
        %1163 = vmatprep.subr.bf16.mxu0 0
        %1164 = vmatpush2.bf16.xpose.msra.mxu0 0
        %1165 = vmatprep.subr.bf16.mxu0 0
        %1166 = vmatpush2.bf16.xpose.msra.mxu0 0
        %1167 = vmatprep.subr.bf16.mxu0 0
        %1168 = vmatpush2.bf16.xpose.msra.mxu0 0
        %1169 = vmatprep.subr.bf16.mxu0 0
        %1170 = vmatpush2.bf16.xpose.msra.mxu0 0
        %1171 = vmatprep.subr.bf16.mxu0 0
        %1172 = vmatpush2.bf16.xpose.msra.mxu0 0
        %1173 = vmatprep.subr.bf16.mxu0 0
        %1174 = vmatpush2.bf16.xpose.msra.mxu0 0
        %1175 = vmatprep.subr.bf16.mxu0 0
        %1176 = vmatpush2.bf16.xpose.msra.mxu0 0
        %1177 = vmatprep.subr.bf16.mxu0 0
        %1178 = vmatpush2.bf16.xpose.msra.mxu0 0
        %1179 = vmatprep.mubr.bf16.mxu0 0
        %1180 = vmatmul.mubr.bf16.gmra.mxu0 %v1142
        %v1181 = vpop.f32.mrf.mxu0
        %v1182 = vadd.f32 0.0, %v1181
        %v1183 = vpop.f32.mrf.mxu0
        %v1184 = vpop.f32.mrf.mxu0
        %v1185 = vpop.f32.mrf.mxu0
        %1186 = vdwg.mxu0
        %v1187 = vsel %vm357, %v1182, -inf
        %1188 = vmax.xlane.f32.xlu0 %v1187
        %v1189 = vpop.xlane.xlu0 %1188
        %v1190 = vsub.f32 %v1182, %v1189
        %v1191 = vmul.f32 %v1190, 1.442695
        %v1192 = vpow.pop %v1191
        %v1193 = vsel %vm357, %v1192, 0.0
        %1194 = vadd.xlane.f32.xlu0 %v1193
        %v1195 = vpop.xlane.xlu0 %1194
        %v1196 = vrcp.pop %v1195
        %v1197 = vmul.f32 %v1192, %v1196
        %v1198 = vpack.c.bf16 %v1197, %v1197
        %1199 = vrot.lane.b32.xlu0 %v306, 36
        %v1200 = vpop.permute.xlu0 %1199
        %v1202 = vsel %vm357, %v1198, 0
        %v1205 = vsel %vm375, %v1200, 0
        %1207 = vmatprep.subr.bf16.mxu0 0
        %1208 = vmatpush1.bf16.msra.mxu0 0
        %1209 = vmatprep.subr.bf16.mxu0 0
        %1210 = vmatpush1.bf16.msra.mxu0 0
        %1211 = vmatprep.subr.bf16.mxu0 0
        %1212 = vmatpush1.bf16.msra.mxu0 0
        %1213 = vmatprep.subr.bf16.mxu0 0
        %1214 = vmatpush1.bf16.msra.mxu0 0
        %1215 = vmatprep.subr.bf16.mxu0 0
        %1216 = vmatpush1.bf16.msra.mxu0 0
        %1217 = vmatprep.subr.bf16.mxu0 0
        %1218 = vmatpush1.bf16.msra.mxu0 0
        %1219 = vmatprep.subr.bf16.mxu0 0
        %1220 = vmatpush1.bf16.msra.mxu0 0
        %1221 = vmatprep.subr.bf16.mxu0 0
        %1222 = vmatpush1.bf16.msra.mxu0 %v1205
        %1223 = vmatprep.subr.bf16.mxu0 0
        %1224 = vmatpush2.bf16.msra.mxu0 0
        %1225 = vmatprep.subr.bf16.mxu0 0
        %1226 = vmatpush2.bf16.msra.mxu0 0
        %1227 = vmatprep.subr.bf16.mxu0 0
        %1228 = vmatpush2.bf16.msra.mxu0 0
        %1229 = vmatprep.subr.bf16.mxu0 0
        %1230 = vmatpush2.bf16.msra.mxu0 0
        %1231 = vmatprep.subr.bf16.mxu0 0
        %1232 = vmatpush2.bf16.msra.mxu0 0
        %1233 = vmatprep.subr.bf16.mxu0 0
        %1234 = vmatpush2.bf16.msra.mxu0 0
        %1235 = vmatprep.subr.bf16.mxu0 0
        %1236 = vmatpush2.bf16.msra.mxu0 0
        %1237 = vmatprep.subr.bf16.mxu0 0
        %1238 = vmatpush2.bf16.msra.mxu0 0
        %1239 = vmatprep.mubr.bf16.mxu0 0
        %1240 = vmatmul.mubr.bf16.gmra.mxu0 %v1202
        %v1241 = vpop.f32.mrf.mxu0
        %v1242 = vadd.f32 0.0, %v1241
        %v1243 = vpop.f32.mrf.mxu0
        %v1244 = vpop.f32.mrf.mxu0
        %v1245 = vpop.f32.mrf.mxu0
        %1246 = vdwg.mxu0
        %v1247 = vpack.c.bf16 %v1242, %v1242
        %v1249 = vunpack.c.l.b16 %v1247
        %v1250 = vpack.c.b16 %v1249, %v1249
        %1251 = vrot.lane.b32.xlu0 %v1250, 28
        %v1252 = vpop.permute.xlu0 %1251
        %vm1254 = vcmask 257248
        %1255 = vst.msk [vmem:[#allocation2] sm:$0xf] %vm1254, %v1252
        %v1256 = vld [vmem:[%s3] sm:$0x1]
        %v1257 = vld [vmem:[#allocation2] sm:$0xf]
        %v1258 = vld [vmem:[#allocation8] sm:$0xf]
        %v1259 = vld [vmem:[#allocation8 + $0x4] sm:$0xf]
        %v1260 = vld [vmem:[#allocation8 + $0x8] sm:$0xf]
        %v1261 = vld [vmem:[#allocation8 + $0xc] sm:$0xf]
        %v1263 = vlaneseq
        %v1264 = vshrl.u32 %v1263, 7
        %v1265 = vsub.s32 0, %v1264
        %v1266 = vrot.slane %v1256, %v1265
        %v1272 = vunpack.c.l.b16 %v1258
        %v1273 = vunpack.c.l.b16 %v1259
        %v1274 = vunpack.c.l.b16 %v1260
        %v1275 = vunpack.c.l.b16 %v1261
        %v1276 = vpack.c.b16 %v1273, %v1272
        %v1277 = vpack.c.b16 %v1275, %v1274
        %v1281 = vsel %vm260, %v1257, 0
        %1283 = vmatprep.subr.bf16.mxu0 0
        %1284 = vmatpush1.bf16.msra.mxu0 0
        %1285 = vmatprep.subr.bf16.mxu0 0
        %1286 = vmatpush1.bf16.msra.mxu0 0
        %1287 = vmatprep.subr.bf16.mxu0 0
        %1288 = vmatpush1.bf16.msra.mxu0 0
        %1289 = vmatprep.subr.bf16.mxu0 0
        %1290 = vmatpush1.bf16.msra.mxu0 0
        %1291 = vmatprep.subr.bf16.mxu0 0
        %1292 = vmatpush1.bf16.msra.mxu0 0
        %1293 = vmatprep.subr.bf16.mxu0 0
        %1294 = vmatpush1.bf16.msra.mxu0 0
        %1295 = vmatprep.subr.bf16.mxu0 0
        %1296 = vmatpush1.bf16.msra.mxu0 %v1277
        %1297 = vmatprep.subr.bf16.mxu0 0
        %1298 = vmatpush1.bf16.msra.mxu0 %v1276
        %1299 = vmatprep.subr.bf16.mxu0 0
        %1300 = vmatpush2.bf16.msra.mxu0 0
        %1301 = vmatprep.subr.bf16.mxu0 0
        %1302 = vmatpush2.bf16.msra.mxu0 0
        %1303 = vmatprep.subr.bf16.mxu0 0
        %1304 = vmatpush2.bf16.msra.mxu0 0
        %1305 = vmatprep.subr.bf16.mxu0 0
        %1306 = vmatpush2.bf16.msra.mxu0 0
        %1307 = vmatprep.subr.bf16.mxu0 0
        %1308 = vmatpush2.bf16.msra.mxu0 0
        %1309 = vmatprep.subr.bf16.mxu0 0
        %1310 = vmatpush2.bf16.msra.mxu0 0
        %1311 = vmatprep.subr.bf16.mxu0 0
        %1312 = vmatpush2.bf16.msra.mxu0 0
        %1313 = vmatprep.subr.bf16.mxu0 0
        %1314 = vmatpush2.bf16.msra.mxu0 0
        %1315 = vmatprep.mubr.bf16.mxu0 0
        %1316 = vmatmul.mubr.bf16.gmra.mxu0 %v1281
        %v1317 = vpop.f32.mrf.mxu0
        %v1318 = vadd.f32 %v1266, %v1317
        %v1319 = vpop.f32.mrf.mxu0
        %v1320 = vpop.f32.mrf.mxu0
        %v1321 = vpop.f32.mrf.mxu0
        %1322 = vdwg.mxu0
        %1323 = vst.msk [vmem:[%s241] sm:$0xff] %vm260, %v1318
        %s1324 = sand.u32 %s119, 1
        %s1325 = scalar_lea.sflag [#allocation5], %s1324
        %s1326 = sand.u32 %s119, 1
        %s1327 = smul.addr %s1326, 8
        %s1328 = scalar_lea.vmem [#allocation9], %s1327
        // Predicated region
        $region49: #{tpu_custom_call.1} parent=35 // pred_check
          %p1329 = pneg %p129
        $region50: #{tpu_custom_call.1} parent=35 // pred_check_branch
          %1331 = sbr.rel (%p1329) target = $region52
        $region51: #{tpu_custom_call.1} parent=35 // pred_region
          %s1333 = ssub.s32 128, 128
          %1334 = vsyncadd %s1325, %s1333
          %s1335 = smul.addr %s22, 128
          %s1336 = scalar_lea.hbm %s4, %s1335
          %s1338 = sshll.u32 %s1328, 4
          %s1339 = int_to_ptr.vmem [resolvable:$true] %s1338
          %1341 = dma.vmem_to_hbm [thread:$0]  %s1339, 128, %s1336, %s1325
        $region52: #{tpu_custom_call.1} parent=35 // pred_fallthru
          _
      $region36: #{tpu_custom_call.1} parent=5 // pred_fallthru
        _
      %p1342 = scmp.le.s32.totalorder 2, %s17
      // Predicated region
      $region53: #{tpu_custom_call.1} parent=5 // pred_check
        %p1343 = pneg %p1342
      $region54: #{tpu_custom_call.1} parent=5 // pred_check_branch
        %1345 = sbr.rel (%p1343) target = $region56
      $region55: #{tpu_custom_call.1} parent=5 // pred_region
        %s1346 = ssub.s32 %s17, 2
        // Predicated region
        $region57: #{tpu_custom_call.1} parent=55 // pred_check
          %p1347 = pneg %p135
        $region58: #{tpu_custom_call.1} parent=55 // pred_check_branch
          %1349 = sbr.rel (%p1347) target = $region60
        $region59: #{tpu_custom_call.1} parent=55 // pred_region
          %s1350 = sand.u32 %s120, 1
          %s1351 = scalar_lea.sflag [#allocation5], %s1350
          %s1352 = sand.u32 %s120, 1
          %s1353 = smul.addr %s1352, 8
          %s1354 = scalar_lea.vmem [#allocation9], %s1353
          %1355 = dma.done %s1351, 128
        $region60: #{tpu_custom_call.1} parent=55 // pred_fallthru
          _
      $region56: #{tpu_custom_call.1} parent=5 // pred_fallthru
        _
    $region6: #{tpu_custom_call.1} parent=1 // loop_footer
      %s21 = sadd.s32 1, %s17
    $region7: #{tpu_custom_call.1} parent=1 // loop_footer_branch
      %16 = sbr.rel target = $region3
    $region8: #{tpu_custom_call.1} parent=1 // loop_exit
      _
    %1356 = vsyncpa [#allocation4], 1
    %s1357 = scalar_lea.sflag [#allocation4], 1
    %1358 = vsyncpa %s1357, 1
    %1359 = vsyncpa [#allocation7], 1
    %1360 = vsyncpa [#allocation5], 1
    %s1361 = scalar_lea.sflag [#allocation5], 1
    %1362 = vsyncpa %s1361, 1

</llo_original>
